<compile_context>
chip_gen: v5e
topology: v5e:2x2
jax: 0.10.0
libtpu: 0.0.40
codegen_flags: <defaults>
</compile_context>

<pallas_src>
import functools

import jax
import jax.numpy as jnp
from jax.experimental import pallas as pl
from jax.experimental.pallas import tpu as pltpu

EPS = 1e-6
HIGH = jax.lax.Precision.HIGHEST


# ----------------------------------------------------------------------------
# Pallas kernel: one grid step == B images.
# ----------------------------------------------------------------------------
def nafblock_kernel(x_ref, wp_ref, o_ref, *, C, H, W):
    B = x_ref.shape[0]
    HW = H * W
    C2 = 2 * C

    # Column layout of the packed weight block (see pack_weights()).
    COL_W1, COL_W4 = 0, C
    COL_WSCA, COL_W3, COL_W5 = 2 * C, 3 * C, 4 * C
    COL_TAP = 5 * C
    COL_VEC = 5 * C + 9

    wp = wp_ref[...]                                   # (2C, 5C+17) f32

    def col(c0, rows=C2):                              # (rows, 1) column slice
        return wp[:rows, c0:c0 + 1]

    b1, b2, b4 = col(COL_VEC + 0), col(COL_VEC + 1), col(COL_VEC + 2)
    bsca, b3 = col(COL_VEC + 3, C), col(COL_VEC + 4, C)
    beta, b5, gamma = (col(COL_VEC + 5, C), col(COL_VEC + 6, C),
                       col(COL_VEC + 7, C))

    # Depthwise-3x3 taps: per-tap channel weight column + in-kernel boundary
    # mask (zero padding), generated from the flattened pixel index.  The mask
    # also zeroes every lane where the circular roll would wrap a pixel in
    # from the opposite image edge, so the roll-based shift stays correct.
    pix = jax.lax.broadcasted_iota(jnp.int32, (1, HW), 1)
    ph = jax.lax.div(pix, jnp.int32(W))
    pw = pix - ph * W
    taps = []
    for t in range(9):
        dh, dw = t // 3 - 1, t % 3 - 1
        valid = ((ph + dh >= 0) & (ph + dh < H) &
                 (pw + dw >= 0) & (pw + dw < W)).astype(jnp.float32)  # (1, HW)
        taps.append((dh * W + dw, col(COL_TAP + t), valid))

    def layer_norm(v):                                 # over channels; affine folded
        mu = jnp.mean(v, axis=0, keepdims=True)
        xc = v - mu
        var = jnp.mean(xc * xc, axis=0, keepdims=True)  # two-pass variance
        return xc * jax.lax.rsqrt(var + EPS)

    def pconv(v, col0, co, b):                         # 1x1 conv as VPU FMAs
        acc = None
        for c in range(v.shape[0]):
            term = wp[:co, col0 + c:col0 + c + 1] * v[c:c + 1, :]
            acc = term if acc is None else acc + term
        return acc + b

    def dwconv3x3(t):                                  # depthwise 3x3, zero pad
        acc = None
        for off, wt, valid in taps:
            shifted = t if off == 0 else pltpu.roll(t, (-off) % HW, axis=1)
            term = shifted * wt * valid                # tap weight, then boundary mask
            acc = term if acc is None else acc + term
        return acc + b2

    for b in range(B):                                 # static unroll, B small
        x = x_ref[b]                                   # (C, HW) f32

        # branch 1: norm1 -> conv1 -> dwconv2 -> SimpleGate -> SCA -> conv3
        t = dwconv3x3(pconv(layer_norm(x), COL_W1, C2, b1))      # (2C, HW)
        g = t[:C] * t[C:]                                        # SimpleGate
        pooled = jnp.mean(g, axis=1, keepdims=True)              # AdaptiveAvgPool2d(1)
        g = g * pconv(pooled, COL_WSCA, C, bsca)                 # SCA (VPU only)
        y = x + pconv(g, COL_W3, C, b3) * beta                   # conv3 + residual

        # branch 2: norm2 -> conv4 -> SimpleGate -> conv5
        f = pconv(layer_norm(y), COL_W4, C2, b4)                 # (2C, HW)
        o_ref[b] = y + pconv(f[:C] * f[C:], COL_W5, C, b5) * gamma


# ----------------------------------------------------------------------------
# Wrapper / glue
# ----------------------------------------------------------------------------
def pack_weights(params, C):
    """Fold LN affines into conv1/conv4 and pack every parameter into one
    (2C, 5C+17) f32 array (a single (8,128)-padded tile for C <= 22)."""
    C2 = 2 * C

    # Fold LayerNorm affine into the following 1x1 conv.
    w1e = params["w1"] * params["ln1w"][None, :]                  # (2C, C)
    b1e = params["w1"] @ params["ln1b"] + params["b1"]            # (2C,)
    w4e = params["w4"] * params["ln2w"][None, :]
    b4e = params["w4"] @ params["ln2b"] + params["b4"]

    ncol = 5 * C + 9 + 8
    wp = jnp.zeros((C2, ncol), jnp.float32)
    wp = wp.at[:, 0:C].set(w1e)
    wp = wp.at[:, C:2 * C].set(w4e)
    wp = wp.at[:C, 2 * C:3 * C].set(params["wsca"])
    wp = wp.at[:C, 3 * C:4 * C].set(params["w3"])
    wp = wp.at[:C, 4 * C:5 * C].set(params["w5"])
    wp = wp.at[:, 5 * C:5 * C + 9].set(params["w2"].reshape(C2, 9))
    base = 5 * C + 9
    for i, (v, rows) in enumerate([
            (b1e, C2), (params["b2"], C2), (b4e, C2),
            (params["bsca"], C), (params["b3"], C), (params["beta"], C),
            (params["b5"], C), (params["gamma"], C)]):
        wp = wp.at[:rows, base + i].set(v)
    return wp


def nafblock_pallas(inp_nchw, params):
    N, C, H, W = inp_nchw.shape
    HW = H * W
    x = inp_nchw.reshape(N, C, HW).astype(jnp.float32)
    wp = pack_weights(params, C)

    # Batch images per grid step to amortize per-step pipeline overhead, but
    # keep >= 2 steps when N >= 2 so both v7x TensorCores get work.
    B = min(max(N // 2, 1), 8)
    while N % B:
        B -= 1
    steps = N // B

    # TODO(synk): for large H*W add a pixel-tile grid axis over HW (lane axis)
    # with a +-W halo for the 3x3 taps instead of keeping the whole image and
    # all f32 intermediates live per step.
    kernel = functools.partial(nafblock_kernel, C=C, H=H, W=W)
    out = pl.pallas_call(
        kernel,
        out_shape=jax.ShapeDtypeStruct((N, C, HW), jnp.float32),
        grid=(steps,),
        in_specs=[pl.BlockSpec((B, C, HW), lambda n: (n, 0, 0)),
                  pl.BlockSpec(wp.shape, lambda n: (0, 0))],
        out_specs=pl.BlockSpec((B, C, HW), lambda n: (n, 0, 0)),
        compiler_params=pltpu.CompilerParams(
            dimension_semantics=("parallel",)),
    )(x, wp)
    return out.reshape(N, C, H, W)


# ----------------------------------------------------------------------------
# Deterministic parameter init (shapes follow NAFBlock.__init__, DW/FFN expand=2)
# ----------------------------------------------------------------------------
def init_params(key, C):
    C2 = 2 * C
    specs = [
        ("ln1w", (C,)), ("ln1b", (C,)),
        ("w1", (C2, C)), ("b1", (C2,)),          # conv1: C -> 2C, 1x1
        ("w2", (C2, 3, 3)), ("b2", (C2,)),       # conv2: depthwise 3x3, 2C
        ("wsca", (C, C)), ("bsca", (C,)),        # SCA 1x1 conv
        ("w3", (C, C)), ("b3", (C,)),            # conv3: C -> C, 1x1
        ("beta", (C,)),
        ("ln2w", (C,)), ("ln2b", (C,)),
        ("w4", (C2, C)), ("b4", (C2,)),          # conv4: C -> 2C, 1x1
        ("w5", (C, C)), ("b5", (C,)),            # conv5: C -> C, 1x1
        ("gamma", (C,)),
    ]
    params = {}
    for i, (name, shape) in enumerate(specs):
        k = jax.random.fold_in(key, i)
        v = 0.2 * jax.random.normal(k, shape, jnp.float32)
        if name in ("ln1w", "ln2w"):
            v = v + 1.0
        params[name] = v
    return params


# ----------------------------------------------------------------------------
# Pure-JAX reference (independent NCHW formulation, real zero-padded dw conv)
# ----------------------------------------------------------------------------
def reference_forward(inp, p):
    N, C, H, W = inp.shape

    def ln(v, w, b):
        mu = jnp.mean(v, axis=1, keepdims=True)
        var = jnp.mean((v - mu) ** 2, axis=1, keepdims=True)
        return ((v - mu) / jnp.sqrt(var + EPS)) * w.reshape(1, C, 1, 1) \
            + b.reshape(1, C, 1, 1)

    def pconv(v, w, b):
        return jnp.einsum("nchw,oc->nohw", v, w, precision=HIGH) \
            + b.reshape(1, -1, 1, 1)

    def dwconv(t, w, b):                              # w: (2C, 3, 3)
        tp = jnp.pad(t, ((0, 0), (0, 0), (1, 1), (1, 1)))
        out = jnp.zeros_like(t)
        for ki in range(3):
            for kj in range(3):
                out = out + tp[:, :, ki:ki + H, kj:kj + W] \
                    * w[:, ki, kj].reshape(1, -1, 1, 1)
        return out + b.reshape(1, -1, 1, 1)

    xn = ln(inp, p["ln1w"], p["ln1b"])
    t = dwconv(pconv(xn, p["w1"], p["b1"]), p["w2"], p["b2"])
    g = t[:, :C] * t[:, C:]
    pooled = jnp.mean(g, axis=(2, 3), keepdims=True)
    sca = jnp.einsum("ncij,oc->noij", pooled, p["wsca"], precision=HIGH) \
        + p["bsca"].reshape(1, -1, 1, 1)
    g = g * sca
    y = inp + pconv(g, p["w3"], p["b3"]) * p["beta"].reshape(1, C, 1, 1)
    yn = ln(y, p["ln2w"], p["ln2b"])
    f = pconv(yn, p["w4"], p["b4"])
    fg = f[:, :C] * f[:, C:]
    return y + pconv(fg, p["w5"], p["b5"]) * p["gamma"].reshape(1, C, 1, 1)


if __name__ == "__main__":
    key = jax.random.PRNGKey(0)
    N, C, H, W = 2, 4, 16, 16

    # PyTorch-style NCHW input (the kernel consumes NCHW directly).
    inp = jax.random.normal(jax.random.fold_in(key, 1000), (N, C, H, W),
                            jnp.float32)
    params = init_params(key, C)

    out = nafblock_pallas(inp, params)
    out = jax.block_until_ready(out)

    ref = reference_forward(inp, params)
    err = float(jnp.max(jnp.abs(out - ref)))
    assert out.shape == (N, C, H, W)
    assert err < 1e-3, f"max abs error too large: {err}"
    print("KERNEL_OK")
</pallas_src>

<mosaic_0001>
module attributes {stable_mosaic.version = 11 : i64} {
  func.func @nafblock_kernel(%arg0: i32, %arg1: memref<1x4x256xf32, #tpu.memory_space<vmem>>, %arg2: memref<8x37xf32, #tpu.memory_space<vmem>>, %arg3: memref<1x4x256xf32, #tpu.memory_space<vmem>>) attributes {dimension_semantics = [#tpu.dimension_semantics<parallel>], iteration_bounds = array<i64: 2>, scalar_prefetch = 0 : i64, scratch_operands = 0 : i64, tpu.core_type = #tpu.core_type<tc>, window_params = [{transform_indices = @transform_0, window_bounds = array<i64: 1, 4, 256>}, {pipeline_mode = #tpu.pipeline_mode<synchronous>, transform_indices = @transform_1, window_bounds = array<i64: 8, 37>}, {transform_indices = @transform_2, window_bounds = array<i64: 1, 4, 256>}]} {
    %c0 = arith.constant 0 : index
    %c0_0 = arith.constant 0 : index
    %0 = vector.load %arg2[%c0, %c0_0] : memref<8x37xf32, #tpu.memory_space<vmem>>, vector<8x37xf32>
    %1 = vector.extract_strided_slice %0 {offsets = [0, 29], sizes = [8, 1], strides = [1, 1]} : vector<8x37xf32> to vector<8x1xf32>
    %2 = vector.extract_strided_slice %0 {offsets = [0, 30], sizes = [8, 1], strides = [1, 1]} : vector<8x37xf32> to vector<8x1xf32>
    %3 = vector.extract_strided_slice %0 {offsets = [0, 31], sizes = [8, 1], strides = [1, 1]} : vector<8x37xf32> to vector<8x1xf32>
    %4 = vector.extract_strided_slice %0 {offsets = [0, 32], sizes = [4, 1], strides = [1, 1]} : vector<8x37xf32> to vector<4x1xf32>
    %5 = vector.extract_strided_slice %0 {offsets = [0, 33], sizes = [4, 1], strides = [1, 1]} : vector<8x37xf32> to vector<4x1xf32>
    %6 = vector.extract_strided_slice %0 {offsets = [0, 34], sizes = [4, 1], strides = [1, 1]} : vector<8x37xf32> to vector<4x1xf32>
    %7 = vector.extract_strided_slice %0 {offsets = [0, 35], sizes = [4, 1], strides = [1, 1]} : vector<8x37xf32> to vector<4x1xf32>
    %8 = vector.extract_strided_slice %0 {offsets = [0, 36], sizes = [4, 1], strides = [1, 1]} : vector<8x37xf32> to vector<4x1xf32>
    %9 = tpu.iota {dimensions = array<i32: 1>} : vector<1x256xi32>
    %c16_i32 = arith.constant 16 : i32
    %10 = vector.broadcast %c16_i32 : i32 to vector<1x256xi32>
    %11 = arith.divsi %9, %10 : vector<1x256xi32>
    %c16_i32_1 = arith.constant 16 : i32
    %12 = vector.broadcast %c16_i32_1 : i32 to vector<1x256xi32>
    %13 = arith.muli %11, %12 : vector<1x256xi32>
    %14 = arith.subi %9, %13 : vector<1x256xi32>
    %c-1_i32 = arith.constant -1 : i32
    %15 = vector.broadcast %c-1_i32 : i32 to vector<1x256xi32>
    %16 = arith.addi %11, %15 : vector<1x256xi32>
    %c0_i32 = arith.constant 0 : i32
    %17 = vector.broadcast %c0_i32 : i32 to vector<1x256xi32>
    %18 = arith.cmpi sge, %16, %17 : vector<1x256xi32>
    %c-1_i32_2 = arith.constant -1 : i32
    %19 = vector.broadcast %c-1_i32_2 : i32 to vector<1x256xi32>
    %20 = arith.addi %11, %19 : vector<1x256xi32>
    %c16_i32_3 = arith.constant 16 : i32
    %21 = vector.broadcast %c16_i32_3 : i32 to vector<1x256xi32>
    %22 = arith.cmpi slt, %20, %21 : vector<1x256xi32>
    %23 = arith.andi %18, %22 : vector<1x256xi1>
    %c-1_i32_4 = arith.constant -1 : i32
    %24 = vector.broadcast %c-1_i32_4 : i32 to vector<1x256xi32>
    %25 = arith.addi %14, %24 : vector<1x256xi32>
    %c0_i32_5 = arith.constant 0 : i32
    %26 = vector.broadcast %c0_i32_5 : i32 to vector<1x256xi32>
    %27 = arith.cmpi sge, %25, %26 : vector<1x256xi32>
    %28 = arith.andi %23, %27 : vector<1x256xi1>
    %c-1_i32_6 = arith.constant -1 : i32
    %29 = vector.broadcast %c-1_i32_6 : i32 to vector<1x256xi32>
    %30 = arith.addi %14, %29 : vector<1x256xi32>
    %c16_i32_7 = arith.constant 16 : i32
    %31 = vector.broadcast %c16_i32_7 : i32 to vector<1x256xi32>
    %32 = arith.cmpi slt, %30, %31 : vector<1x256xi32>
    %33 = arith.andi %28, %32 : vector<1x256xi1>
    %34 = arith.extui %33 : vector<1x256xi1> to vector<1x256xi32>
    %35 = arith.sitofp %34 : vector<1x256xi32> to vector<1x256xf32>
    %36 = vector.extract_strided_slice %0 {offsets = [0, 20], sizes = [8, 1], strides = [1, 1]} : vector<8x37xf32> to vector<8x1xf32>
    %c-1_i32_8 = arith.constant -1 : i32
    %37 = vector.broadcast %c-1_i32_8 : i32 to vector<1x256xi32>
    %38 = arith.addi %11, %37 : vector<1x256xi32>
    %c0_i32_9 = arith.constant 0 : i32
    %39 = vector.broadcast %c0_i32_9 : i32 to vector<1x256xi32>
    %40 = arith.cmpi sge, %38, %39 : vector<1x256xi32>
    %c-1_i32_10 = arith.constant -1 : i32
    %41 = vector.broadcast %c-1_i32_10 : i32 to vector<1x256xi32>
    %42 = arith.addi %11, %41 : vector<1x256xi32>
    %c16_i32_11 = arith.constant 16 : i32
    %43 = vector.broadcast %c16_i32_11 : i32 to vector<1x256xi32>
    %44 = arith.cmpi slt, %42, %43 : vector<1x256xi32>
    %45 = arith.andi %40, %44 : vector<1x256xi1>
    %c0_i32_12 = arith.constant 0 : i32
    %46 = vector.broadcast %c0_i32_12 : i32 to vector<1x256xi32>
    %47 = arith.addi %14, %46 : vector<1x256xi32>
    %c0_i32_13 = arith.constant 0 : i32
    %48 = vector.broadcast %c0_i32_13 : i32 to vector<1x256xi32>
    %49 = arith.cmpi sge, %47, %48 : vector<1x256xi32>
    %50 = arith.andi %45, %49 : vector<1x256xi1>
    %c0_i32_14 = arith.constant 0 : i32
    %51 = vector.broadcast %c0_i32_14 : i32 to vector<1x256xi32>
    %52 = arith.addi %14, %51 : vector<1x256xi32>
    %c16_i32_15 = arith.constant 16 : i32
    %53 = vector.broadcast %c16_i32_15 : i32 to vector<1x256xi32>
    %54 = arith.cmpi slt, %52, %53 : vector<1x256xi32>
    %55 = arith.andi %50, %54 : vector<1x256xi1>
    %56 = arith.extui %55 : vector<1x256xi1> to vector<1x256xi32>
    %57 = arith.sitofp %56 : vector<1x256xi32> to vector<1x256xf32>
    %58 = vector.extract_strided_slice %0 {offsets = [0, 21], sizes = [8, 1], strides = [1, 1]} : vector<8x37xf32> to vector<8x1xf32>
    %c-1_i32_16 = arith.constant -1 : i32
    %59 = vector.broadcast %c-1_i32_16 : i32 to vector<1x256xi32>
    %60 = arith.addi %11, %59 : vector<1x256xi32>
    %c0_i32_17 = arith.constant 0 : i32
    %61 = vector.broadcast %c0_i32_17 : i32 to vector<1x256xi32>
    %62 = arith.cmpi sge, %60, %61 : vector<1x256xi32>
    %c-1_i32_18 = arith.constant -1 : i32
    %63 = vector.broadcast %c-1_i32_18 : i32 to vector<1x256xi32>
    %64 = arith.addi %11, %63 : vector<1x256xi32>
    %c16_i32_19 = arith.constant 16 : i32
    %65 = vector.broadcast %c16_i32_19 : i32 to vector<1x256xi32>
    %66 = arith.cmpi slt, %64, %65 : vector<1x256xi32>
    %67 = arith.andi %62, %66 : vector<1x256xi1>
    %c1_i32 = arith.constant 1 : i32
    %68 = vector.broadcast %c1_i32 : i32 to vector<1x256xi32>
    %69 = arith.addi %14, %68 : vector<1x256xi32>
    %c0_i32_20 = arith.constant 0 : i32
    %70 = vector.broadcast %c0_i32_20 : i32 to vector<1x256xi32>
    %71 = arith.cmpi sge, %69, %70 : vector<1x256xi32>
    %72 = arith.andi %67, %71 : vector<1x256xi1>
    %c1_i32_21 = arith.constant 1 : i32
    %73 = vector.broadcast %c1_i32_21 : i32 to vector<1x256xi32>
    %74 = arith.addi %14, %73 : vector<1x256xi32>
    %c16_i32_22 = arith.constant 16 : i32
    %75 = vector.broadcast %c16_i32_22 : i32 to vector<1x256xi32>
    %76 = arith.cmpi slt, %74, %75 : vector<1x256xi32>
    %77 = arith.andi %72, %76 : vector<1x256xi1>
    %78 = arith.extui %77 : vector<1x256xi1> to vector<1x256xi32>
    %79 = arith.sitofp %78 : vector<1x256xi32> to vector<1x256xf32>
    %80 = vector.extract_strided_slice %0 {offsets = [0, 22], sizes = [8, 1], strides = [1, 1]} : vector<8x37xf32> to vector<8x1xf32>
    %c0_i32_23 = arith.constant 0 : i32
    %81 = vector.broadcast %c0_i32_23 : i32 to vector<1x256xi32>
    %82 = arith.addi %11, %81 : vector<1x256xi32>
    %c0_i32_24 = arith.constant 0 : i32
    %83 = vector.broadcast %c0_i32_24 : i32 to vector<1x256xi32>
    %84 = arith.cmpi sge, %82, %83 : vector<1x256xi32>
    %c0_i32_25 = arith.constant 0 : i32
    %85 = vector.broadcast %c0_i32_25 : i32 to vector<1x256xi32>
    %86 = arith.addi %11, %85 : vector<1x256xi32>
    %c16_i32_26 = arith.constant 16 : i32
    %87 = vector.broadcast %c16_i32_26 : i32 to vector<1x256xi32>
    %88 = arith.cmpi slt, %86, %87 : vector<1x256xi32>
    %89 = arith.andi %84, %88 : vector<1x256xi1>
    %c-1_i32_27 = arith.constant -1 : i32
    %90 = vector.broadcast %c-1_i32_27 : i32 to vector<1x256xi32>
    %91 = arith.addi %14, %90 : vector<1x256xi32>
    %c0_i32_28 = arith.constant 0 : i32
    %92 = vector.broadcast %c0_i32_28 : i32 to vector<1x256xi32>
    %93 = arith.cmpi sge, %91, %92 : vector<1x256xi32>
    %94 = arith.andi %89, %93 : vector<1x256xi1>
    %c-1_i32_29 = arith.constant -1 : i32
    %95 = vector.broadcast %c-1_i32_29 : i32 to vector<1x256xi32>
    %96 = arith.addi %14, %95 : vector<1x256xi32>
    %c16_i32_30 = arith.constant 16 : i32
    %97 = vector.broadcast %c16_i32_30 : i32 to vector<1x256xi32>
    %98 = arith.cmpi slt, %96, %97 : vector<1x256xi32>
    %99 = arith.andi %94, %98 : vector<1x256xi1>
    %100 = arith.extui %99 : vector<1x256xi1> to vector<1x256xi32>
    %101 = arith.sitofp %100 : vector<1x256xi32> to vector<1x256xf32>
    %102 = vector.extract_strided_slice %0 {offsets = [0, 23], sizes = [8, 1], strides = [1, 1]} : vector<8x37xf32> to vector<8x1xf32>
    %c0_i32_31 = arith.constant 0 : i32
    %103 = vector.broadcast %c0_i32_31 : i32 to vector<1x256xi32>
    %104 = arith.addi %11, %103 : vector<1x256xi32>
    %c0_i32_32 = arith.constant 0 : i32
    %105 = vector.broadcast %c0_i32_32 : i32 to vector<1x256xi32>
    %106 = arith.cmpi sge, %104, %105 : vector<1x256xi32>
    %c0_i32_33 = arith.constant 0 : i32
    %107 = vector.broadcast %c0_i32_33 : i32 to vector<1x256xi32>
    %108 = arith.addi %11, %107 : vector<1x256xi32>
    %c16_i32_34 = arith.constant 16 : i32
    %109 = vector.broadcast %c16_i32_34 : i32 to vector<1x256xi32>
    %110 = arith.cmpi slt, %108, %109 : vector<1x256xi32>
    %111 = arith.andi %106, %110 : vector<1x256xi1>
    %c0_i32_35 = arith.constant 0 : i32
    %112 = vector.broadcast %c0_i32_35 : i32 to vector<1x256xi32>
    %113 = arith.addi %14, %112 : vector<1x256xi32>
    %c0_i32_36 = arith.constant 0 : i32
    %114 = vector.broadcast %c0_i32_36 : i32 to vector<1x256xi32>
    %115 = arith.cmpi sge, %113, %114 : vector<1x256xi32>
    %116 = arith.andi %111, %115 : vector<1x256xi1>
    %c0_i32_37 = arith.constant 0 : i32
    %117 = vector.broadcast %c0_i32_37 : i32 to vector<1x256xi32>
    %118 = arith.addi %14, %117 : vector<1x256xi32>
    %c16_i32_38 = arith.constant 16 : i32
    %119 = vector.broadcast %c16_i32_38 : i32 to vector<1x256xi32>
    %120 = arith.cmpi slt, %118, %119 : vector<1x256xi32>
    %121 = arith.andi %116, %120 : vector<1x256xi1>
    %122 = arith.extui %121 : vector<1x256xi1> to vector<1x256xi32>
    %123 = arith.sitofp %122 : vector<1x256xi32> to vector<1x256xf32>
    %124 = vector.extract_strided_slice %0 {offsets = [0, 24], sizes = [8, 1], strides = [1, 1]} : vector<8x37xf32> to vector<8x1xf32>
    %c0_i32_39 = arith.constant 0 : i32
    %125 = vector.broadcast %c0_i32_39 : i32 to vector<1x256xi32>
    %126 = arith.addi %11, %125 : vector<1x256xi32>
    %c0_i32_40 = arith.constant 0 : i32
    %127 = vector.broadcast %c0_i32_40 : i32 to vector<1x256xi32>
    %128 = arith.cmpi sge, %126, %127 : vector<1x256xi32>
    %c0_i32_41 = arith.constant 0 : i32
    %129 = vector.broadcast %c0_i32_41 : i32 to vector<1x256xi32>
    %130 = arith.addi %11, %129 : vector<1x256xi32>
    %c16_i32_42 = arith.constant 16 : i32
    %131 = vector.broadcast %c16_i32_42 : i32 to vector<1x256xi32>
    %132 = arith.cmpi slt, %130, %131 : vector<1x256xi32>
    %133 = arith.andi %128, %132 : vector<1x256xi1>
    %c1_i32_43 = arith.constant 1 : i32
    %134 = vector.broadcast %c1_i32_43 : i32 to vector<1x256xi32>
    %135 = arith.addi %14, %134 : vector<1x256xi32>
    %c0_i32_44 = arith.constant 0 : i32
    %136 = vector.broadcast %c0_i32_44 : i32 to vector<1x256xi32>
    %137 = arith.cmpi sge, %135, %136 : vector<1x256xi32>
    %138 = arith.andi %133, %137 : vector<1x256xi1>
    %c1_i32_45 = arith.constant 1 : i32
    %139 = vector.broadcast %c1_i32_45 : i32 to vector<1x256xi32>
    %140 = arith.addi %14, %139 : vector<1x256xi32>
    %c16_i32_46 = arith.constant 16 : i32
    %141 = vector.broadcast %c16_i32_46 : i32 to vector<1x256xi32>
    %142 = arith.cmpi slt, %140, %141 : vector<1x256xi32>
    %143 = arith.andi %138, %142 : vector<1x256xi1>
    %144 = arith.extui %143 : vector<1x256xi1> to vector<1x256xi32>
    %145 = arith.sitofp %144 : vector<1x256xi32> to vector<1x256xf32>
    %146 = vector.extract_strided_slice %0 {offsets = [0, 25], sizes = [8, 1], strides = [1, 1]} : vector<8x37xf32> to vector<8x1xf32>
    %c1_i32_47 = arith.constant 1 : i32
    %147 = vector.broadcast %c1_i32_47 : i32 to vector<1x256xi32>
    %148 = arith.addi %11, %147 : vector<1x256xi32>
    %c0_i32_48 = arith.constant 0 : i32
    %149 = vector.broadcast %c0_i32_48 : i32 to vector<1x256xi32>
    %150 = arith.cmpi sge, %148, %149 : vector<1x256xi32>
    %c1_i32_49 = arith.constant 1 : i32
    %151 = vector.broadcast %c1_i32_49 : i32 to vector<1x256xi32>
    %152 = arith.addi %11, %151 : vector<1x256xi32>
    %c16_i32_50 = arith.constant 16 : i32
    %153 = vector.broadcast %c16_i32_50 : i32 to vector<1x256xi32>
    %154 = arith.cmpi slt, %152, %153 : vector<1x256xi32>
    %155 = arith.andi %150, %154 : vector<1x256xi1>
    %c-1_i32_51 = arith.constant -1 : i32
    %156 = vector.broadcast %c-1_i32_51 : i32 to vector<1x256xi32>
    %157 = arith.addi %14, %156 : vector<1x256xi32>
    %c0_i32_52 = arith.constant 0 : i32
    %158 = vector.broadcast %c0_i32_52 : i32 to vector<1x256xi32>
    %159 = arith.cmpi sge, %157, %158 : vector<1x256xi32>
    %160 = arith.andi %155, %159 : vector<1x256xi1>
    %c-1_i32_53 = arith.constant -1 : i32
    %161 = vector.broadcast %c-1_i32_53 : i32 to vector<1x256xi32>
    %162 = arith.addi %14, %161 : vector<1x256xi32>
    %c16_i32_54 = arith.constant 16 : i32
    %163 = vector.broadcast %c16_i32_54 : i32 to vector<1x256xi32>
    %164 = arith.cmpi slt, %162, %163 : vector<1x256xi32>
    %165 = arith.andi %160, %164 : vector<1x256xi1>
    %166 = arith.extui %165 : vector<1x256xi1> to vector<1x256xi32>
    %167 = arith.sitofp %166 : vector<1x256xi32> to vector<1x256xf32>
    %168 = vector.extract_strided_slice %0 {offsets = [0, 26], sizes = [8, 1], strides = [1, 1]} : vector<8x37xf32> to vector<8x1xf32>
    %c1_i32_55 = arith.constant 1 : i32
    %169 = vector.broadcast %c1_i32_55 : i32 to vector<1x256xi32>
    %170 = arith.addi %11, %169 : vector<1x256xi32>
    %c0_i32_56 = arith.constant 0 : i32
    %171 = vector.broadcast %c0_i32_56 : i32 to vector<1x256xi32>
    %172 = arith.cmpi sge, %170, %171 : vector<1x256xi32>
    %c1_i32_57 = arith.constant 1 : i32
    %173 = vector.broadcast %c1_i32_57 : i32 to vector<1x256xi32>
    %174 = arith.addi %11, %173 : vector<1x256xi32>
    %c16_i32_58 = arith.constant 16 : i32
    %175 = vector.broadcast %c16_i32_58 : i32 to vector<1x256xi32>
    %176 = arith.cmpi slt, %174, %175 : vector<1x256xi32>
    %177 = arith.andi %172, %176 : vector<1x256xi1>
    %c0_i32_59 = arith.constant 0 : i32
    %178 = vector.broadcast %c0_i32_59 : i32 to vector<1x256xi32>
    %179 = arith.addi %14, %178 : vector<1x256xi32>
    %c0_i32_60 = arith.constant 0 : i32
    %180 = vector.broadcast %c0_i32_60 : i32 to vector<1x256xi32>
    %181 = arith.cmpi sge, %179, %180 : vector<1x256xi32>
    %182 = arith.andi %177, %181 : vector<1x256xi1>
    %c0_i32_61 = arith.constant 0 : i32
    %183 = vector.broadcast %c0_i32_61 : i32 to vector<1x256xi32>
    %184 = arith.addi %14, %183 : vector<1x256xi32>
    %c16_i32_62 = arith.constant 16 : i32
    %185 = vector.broadcast %c16_i32_62 : i32 to vector<1x256xi32>
    %186 = arith.cmpi slt, %184, %185 : vector<1x256xi32>
    %187 = arith.andi %182, %186 : vector<1x256xi1>
    %188 = arith.extui %187 : vector<1x256xi1> to vector<1x256xi32>
    %189 = arith.sitofp %188 : vector<1x256xi32> to vector<1x256xf32>
    %190 = vector.extract_strided_slice %0 {offsets = [0, 27], sizes = [8, 1], strides = [1, 1]} : vector<8x37xf32> to vector<8x1xf32>
    %c1_i32_63 = arith.constant 1 : i32
    %191 = vector.broadcast %c1_i32_63 : i32 to vector<1x256xi32>
    %192 = arith.addi %11, %191 : vector<1x256xi32>
    %c0_i32_64 = arith.constant 0 : i32
    %193 = vector.broadcast %c0_i32_64 : i32 to vector<1x256xi32>
    %194 = arith.cmpi sge, %192, %193 : vector<1x256xi32>
    %c1_i32_65 = arith.constant 1 : i32
    %195 = vector.broadcast %c1_i32_65 : i32 to vector<1x256xi32>
    %196 = arith.addi %11, %195 : vector<1x256xi32>
    %c16_i32_66 = arith.constant 16 : i32
    %197 = vector.broadcast %c16_i32_66 : i32 to vector<1x256xi32>
    %198 = arith.cmpi slt, %196, %197 : vector<1x256xi32>
    %199 = arith.andi %194, %198 : vector<1x256xi1>
    %c1_i32_67 = arith.constant 1 : i32
    %200 = vector.broadcast %c1_i32_67 : i32 to vector<1x256xi32>
    %201 = arith.addi %14, %200 : vector<1x256xi32>
    %c0_i32_68 = arith.constant 0 : i32
    %202 = vector.broadcast %c0_i32_68 : i32 to vector<1x256xi32>
    %203 = arith.cmpi sge, %201, %202 : vector<1x256xi32>
    %204 = arith.andi %199, %203 : vector<1x256xi1>
    %c1_i32_69 = arith.constant 1 : i32
    %205 = vector.broadcast %c1_i32_69 : i32 to vector<1x256xi32>
    %206 = arith.addi %14, %205 : vector<1x256xi32>
    %c16_i32_70 = arith.constant 16 : i32
    %207 = vector.broadcast %c16_i32_70 : i32 to vector<1x256xi32>
    %208 = arith.cmpi slt, %206, %207 : vector<1x256xi32>
    %209 = arith.andi %204, %208 : vector<1x256xi1>
    %210 = arith.extui %209 : vector<1x256xi1> to vector<1x256xi32>
    %211 = arith.sitofp %210 : vector<1x256xi32> to vector<1x256xf32>
    %212 = vector.extract_strided_slice %0 {offsets = [0, 28], sizes = [8, 1], strides = [1, 1]} : vector<8x37xf32> to vector<8x1xf32>
    %c0_71 = arith.constant 0 : index
    %c0_72 = arith.constant 0 : index
    %c0_73 = arith.constant 0 : index
    %213 = vector.load %arg1[%c0_71, %c0_72, %c0_73] : memref<1x4x256xf32, #tpu.memory_space<vmem>>, vector<1x4x256xf32>
    %214 = vector.shape_cast %213 : vector<1x4x256xf32> to vector<4x256xf32>
    %cst = arith.constant dense<0.000000e+00> : vector<256xf32>
    %215 = vector.multi_reduction <add>, %214, %cst [0] : vector<4x256xf32> to vector<256xf32>
    %216 = vector.shape_cast %215 : vector<256xf32> to vector<1x256xf32>
    %cst_74 = arith.constant 4.000000e+00 : f32
    %217 = vector.broadcast %cst_74 : f32 to vector<1x256xf32>
    %218 = arith.divf %216, %217 : vector<1x256xf32>
    %219 = vector.broadcast %218 : vector<1x256xf32> to vector<4x256xf32>
    %220 = arith.subf %214, %219 : vector<4x256xf32>
    %221 = arith.mulf %220, %220 : vector<4x256xf32>
    %cst_75 = arith.constant dense<0.000000e+00> : vector<256xf32>
    %222 = vector.multi_reduction <add>, %221, %cst_75 [0] : vector<4x256xf32> to vector<256xf32>
    %223 = vector.shape_cast %222 : vector<256xf32> to vector<1x256xf32>
    %cst_76 = arith.constant 4.000000e+00 : f32
    %224 = vector.broadcast %cst_76 : f32 to vector<1x256xf32>
    %225 = arith.divf %223, %224 : vector<1x256xf32>
    %cst_77 = arith.constant 9.99999997E-7 : f32
    %226 = vector.broadcast %cst_77 : f32 to vector<1x256xf32>
    %227 = arith.addf %225, %226 : vector<1x256xf32>
    %228 = math.rsqrt %227 : vector<1x256xf32>
    %229 = vector.broadcast %228 : vector<1x256xf32> to vector<4x256xf32>
    %230 = arith.mulf %220, %229 : vector<4x256xf32>
    %231 = vector.extract_strided_slice %0 {offsets = [0, 0], sizes = [8, 1], strides = [1, 1]} : vector<8x37xf32> to vector<8x1xf32>
    %232 = vector.extract_strided_slice %230 {offsets = [0, 0], sizes = [1, 256], strides = [1, 1]} : vector<4x256xf32> to vector<1x256xf32>
    %233 = vector.broadcast %231 : vector<8x1xf32> to vector<8x256xf32>
    %234 = vector.broadcast %232 : vector<1x256xf32> to vector<8x256xf32>
    %235 = arith.mulf %233, %234 : vector<8x256xf32>
    %236 = vector.extract_strided_slice %0 {offsets = [0, 1], sizes = [8, 1], strides = [1, 1]} : vector<8x37xf32> to vector<8x1xf32>
    %237 = vector.extract_strided_slice %230 {offsets = [1, 0], sizes = [1, 256], strides = [1, 1]} : vector<4x256xf32> to vector<1x256xf32>
    %238 = vector.broadcast %236 : vector<8x1xf32> to vector<8x256xf32>
    %239 = vector.broadcast %237 : vector<1x256xf32> to vector<8x256xf32>
    %240 = arith.mulf %238, %239 : vector<8x256xf32>
    %241 = arith.addf %235, %240 : vector<8x256xf32>
    %242 = vector.extract_strided_slice %0 {offsets = [0, 2], sizes = [8, 1], strides = [1, 1]} : vector<8x37xf32> to vector<8x1xf32>
    %243 = vector.extract_strided_slice %230 {offsets = [2, 0], sizes = [1, 256], strides = [1, 1]} : vector<4x256xf32> to vector<1x256xf32>
    %244 = vector.broadcast %242 : vector<8x1xf32> to vector<8x256xf32>
    %245 = vector.broadcast %243 : vector<1x256xf32> to vector<8x256xf32>
    %246 = arith.mulf %244, %245 : vector<8x256xf32>
    %247 = arith.addf %241, %246 : vector<8x256xf32>
    %248 = vector.extract_strided_slice %0 {offsets = [0, 3], sizes = [8, 1], strides = [1, 1]} : vector<8x37xf32> to vector<8x1xf32>
    %249 = vector.extract_strided_slice %230 {offsets = [3, 0], sizes = [1, 256], strides = [1, 1]} : vector<4x256xf32> to vector<1x256xf32>
    %250 = vector.broadcast %248 : vector<8x1xf32> to vector<8x256xf32>
    %251 = vector.broadcast %249 : vector<1x256xf32> to vector<8x256xf32>
    %252 = arith.mulf %250, %251 : vector<8x256xf32>
    %253 = arith.addf %247, %252 : vector<8x256xf32>
    %254 = vector.broadcast %1 : vector<8x1xf32> to vector<8x256xf32>
    %255 = arith.addf %253, %254 : vector<8x256xf32>
    %c17_i32 = arith.constant 17 : i32
    %256 = tpu.dynamic_rotate %255 by %c17_i32 dim 1 : vector<8x256xf32>, i32 -> vector<8x256xf32>
    %257 = vector.broadcast %36 : vector<8x1xf32> to vector<8x256xf32>
    %258 = arith.mulf %256, %257 : vector<8x256xf32>
    %259 = vector.broadcast %35 : vector<1x256xf32> to vector<8x256xf32>
    %260 = arith.mulf %258, %259 : vector<8x256xf32>
    %c16_i32_78 = arith.constant 16 : i32
    %261 = tpu.dynamic_rotate %255 by %c16_i32_78 dim 1 : vector<8x256xf32>, i32 -> vector<8x256xf32>
    %262 = vector.broadcast %58 : vector<8x1xf32> to vector<8x256xf32>
    %263 = arith.mulf %261, %262 : vector<8x256xf32>
    %264 = vector.broadcast %57 : vector<1x256xf32> to vector<8x256xf32>
    %265 = arith.mulf %263, %264 : vector<8x256xf32>
    %266 = arith.addf %260, %265 : vector<8x256xf32>
    %c15_i32 = arith.constant 15 : i32
    %267 = tpu.dynamic_rotate %255 by %c15_i32 dim 1 : vector<8x256xf32>, i32 -> vector<8x256xf32>
    %268 = vector.broadcast %80 : vector<8x1xf32> to vector<8x256xf32>
    %269 = arith.mulf %267, %268 : vector<8x256xf32>
    %270 = vector.broadcast %79 : vector<1x256xf32> to vector<8x256xf32>
    %271 = arith.mulf %269, %270 : vector<8x256xf32>
    %272 = arith.addf %266, %271 : vector<8x256xf32>
    %c1_i32_79 = arith.constant 1 : i32
    %273 = tpu.dynamic_rotate %255 by %c1_i32_79 dim 1 : vector<8x256xf32>, i32 -> vector<8x256xf32>
    %274 = vector.broadcast %102 : vector<8x1xf32> to vector<8x256xf32>
    %275 = arith.mulf %273, %274 : vector<8x256xf32>
    %276 = vector.broadcast %101 : vector<1x256xf32> to vector<8x256xf32>
    %277 = arith.mulf %275, %276 : vector<8x256xf32>
    %278 = arith.addf %272, %277 : vector<8x256xf32>
    %279 = vector.broadcast %124 : vector<8x1xf32> to vector<8x256xf32>
    %280 = arith.mulf %255, %279 : vector<8x256xf32>
    %281 = vector.broadcast %123 : vector<1x256xf32> to vector<8x256xf32>
    %282 = arith.mulf %280, %281 : vector<8x256xf32>
    %283 = arith.addf %278, %282 : vector<8x256xf32>
    %c255_i32 = arith.constant 255 : i32
    %284 = tpu.dynamic_rotate %255 by %c255_i32 dim 1 : vector<8x256xf32>, i32 -> vector<8x256xf32>
    %285 = vector.broadcast %146 : vector<8x1xf32> to vector<8x256xf32>
    %286 = arith.mulf %284, %285 : vector<8x256xf32>
    %287 = vector.broadcast %145 : vector<1x256xf32> to vector<8x256xf32>
    %288 = arith.mulf %286, %287 : vector<8x256xf32>
    %289 = arith.addf %283, %288 : vector<8x256xf32>
    %c241_i32 = arith.constant 241 : i32
    %290 = tpu.dynamic_rotate %255 by %c241_i32 dim 1 : vector<8x256xf32>, i32 -> vector<8x256xf32>
    %291 = vector.broadcast %168 : vector<8x1xf32> to vector<8x256xf32>
    %292 = arith.mulf %290, %291 : vector<8x256xf32>
    %293 = vector.broadcast %167 : vector<1x256xf32> to vector<8x256xf32>
    %294 = arith.mulf %292, %293 : vector<8x256xf32>
    %295 = arith.addf %289, %294 : vector<8x256xf32>
    %c240_i32 = arith.constant 240 : i32
    %296 = tpu.dynamic_rotate %255 by %c240_i32 dim 1 : vector<8x256xf32>, i32 -> vector<8x256xf32>
    %297 = vector.broadcast %190 : vector<8x1xf32> to vector<8x256xf32>
    %298 = arith.mulf %296, %297 : vector<8x256xf32>
    %299 = vector.broadcast %189 : vector<1x256xf32> to vector<8x256xf32>
    %300 = arith.mulf %298, %299 : vector<8x256xf32>
    %301 = arith.addf %295, %300 : vector<8x256xf32>
    %c239_i32 = arith.constant 239 : i32
    %302 = tpu.dynamic_rotate %255 by %c239_i32 dim 1 : vector<8x256xf32>, i32 -> vector<8x256xf32>
    %303 = vector.broadcast %212 : vector<8x1xf32> to vector<8x256xf32>
    %304 = arith.mulf %302, %303 : vector<8x256xf32>
    %305 = vector.broadcast %211 : vector<1x256xf32> to vector<8x256xf32>
    %306 = arith.mulf %304, %305 : vector<8x256xf32>
    %307 = arith.addf %301, %306 : vector<8x256xf32>
    %308 = vector.broadcast %2 : vector<8x1xf32> to vector<8x256xf32>
    %309 = arith.addf %307, %308 : vector<8x256xf32>
    %310 = vector.extract_strided_slice %309 {offsets = [0, 0], sizes = [4, 256], strides = [1, 1]} : vector<8x256xf32> to vector<4x256xf32>
    %311 = vector.extract_strided_slice %309 {offsets = [4, 0], sizes = [4, 256], strides = [1, 1]} : vector<8x256xf32> to vector<4x256xf32>
    %312 = arith.mulf %310, %311 : vector<4x256xf32>
    %cst_80 = arith.constant dense<0.000000e+00> : vector<4xf32>
    %313 = vector.multi_reduction <add>, %312, %cst_80 [1] : vector<4x256xf32> to vector<4xf32>
    %314 = vector.shape_cast %313 : vector<4xf32> to vector<4x1xf32>
    %cst_81 = arith.constant 2.560000e+02 : f32
    %315 = vector.broadcast %cst_81 : f32 to vector<4x1xf32>
    %316 = arith.divf %314, %315 : vector<4x1xf32>
    %317 = vector.extract_strided_slice %0 {offsets = [0, 8], sizes = [4, 1], strides = [1, 1]} : vector<8x37xf32> to vector<4x1xf32>
    %318 = vector.extract_strided_slice %316 {offsets = [0, 0], sizes = [1, 1], strides = [1, 1]} : vector<4x1xf32> to vector<1x1xf32>
    %319 = vector.broadcast %318 : vector<1x1xf32> to vector<4x1xf32>
    %320 = arith.mulf %317, %319 : vector<4x1xf32>
    %321 = vector.extract_strided_slice %0 {offsets = [0, 9], sizes = [4, 1], strides = [1, 1]} : vector<8x37xf32> to vector<4x1xf32>
    %322 = vector.extract_strided_slice %316 {offsets = [1, 0], sizes = [1, 1], strides = [1, 1]} : vector<4x1xf32> to vector<1x1xf32>
    %323 = vector.broadcast %322 : vector<1x1xf32> to vector<4x1xf32>
    %324 = arith.mulf %321, %323 : vector<4x1xf32>
    %325 = arith.addf %320, %324 : vector<4x1xf32>
    %326 = vector.extract_strided_slice %0 {offsets = [0, 10], sizes = [4, 1], strides = [1, 1]} : vector<8x37xf32> to vector<4x1xf32>
    %327 = vector.extract_strided_slice %316 {offsets = [2, 0], sizes = [1, 1], strides = [1, 1]} : vector<4x1xf32> to vector<1x1xf32>
    %328 = vector.broadcast %327 : vector<1x1xf32> to vector<4x1xf32>
    %329 = arith.mulf %326, %328 : vector<4x1xf32>
    %330 = arith.addf %325, %329 : vector<4x1xf32>
    %331 = vector.extract_strided_slice %0 {offsets = [0, 11], sizes = [4, 1], strides = [1, 1]} : vector<8x37xf32> to vector<4x1xf32>
    %332 = vector.extract_strided_slice %316 {offsets = [3, 0], sizes = [1, 1], strides = [1, 1]} : vector<4x1xf32> to vector<1x1xf32>
    %333 = vector.broadcast %332 : vector<1x1xf32> to vector<4x1xf32>
    %334 = arith.mulf %331, %333 : vector<4x1xf32>
    %335 = arith.addf %330, %334 : vector<4x1xf32>
    %336 = arith.addf %335, %4 : vector<4x1xf32>
    %337 = vector.broadcast %336 : vector<4x1xf32> to vector<4x256xf32>
    %338 = arith.mulf %312, %337 : vector<4x256xf32>
    %339 = vector.extract_strided_slice %0 {offsets = [0, 12], sizes = [4, 1], strides = [1, 1]} : vector<8x37xf32> to vector<4x1xf32>
    %340 = vector.extract_strided_slice %338 {offsets = [0, 0], sizes = [1, 256], strides = [1, 1]} : vector<4x256xf32> to vector<1x256xf32>
    %341 = vector.broadcast %339 : vector<4x1xf32> to vector<4x256xf32>
    %342 = vector.broadcast %340 : vector<1x256xf32> to vector<4x256xf32>
    %343 = arith.mulf %341, %342 : vector<4x256xf32>
    %344 = vector.extract_strided_slice %0 {offsets = [0, 13], sizes = [4, 1], strides = [1, 1]} : vector<8x37xf32> to vector<4x1xf32>
    %345 = vector.extract_strided_slice %338 {offsets = [1, 0], sizes = [1, 256], strides = [1, 1]} : vector<4x256xf32> to vector<1x256xf32>
    %346 = vector.broadcast %344 : vector<4x1xf32> to vector<4x256xf32>
    %347 = vector.broadcast %345 : vector<1x256xf32> to vector<4x256xf32>
    %348 = arith.mulf %346, %347 : vector<4x256xf32>
    %349 = arith.addf %343, %348 : vector<4x256xf32>
    %350 = vector.extract_strided_slice %0 {offsets = [0, 14], sizes = [4, 1], strides = [1, 1]} : vector<8x37xf32> to vector<4x1xf32>
    %351 = vector.extract_strided_slice %338 {offsets = [2, 0], sizes = [1, 256], strides = [1, 1]} : vector<4x256xf32> to vector<1x256xf32>
    %352 = vector.broadcast %350 : vector<4x1xf32> to vector<4x256xf32>
    %353 = vector.broadcast %351 : vector<1x256xf32> to vector<4x256xf32>
    %354 = arith.mulf %352, %353 : vector<4x256xf32>
    %355 = arith.addf %349, %354 : vector<4x256xf32>
    %356 = vector.extract_strided_slice %0 {offsets = [0, 15], sizes = [4, 1], strides = [1, 1]} : vector<8x37xf32> to vector<4x1xf32>
    %357 = vector.extract_strided_slice %338 {offsets = [3, 0], sizes = [1, 256], strides = [1, 1]} : vector<4x256xf32> to vector<1x256xf32>
    %358 = vector.broadcast %356 : vector<4x1xf32> to vector<4x256xf32>
    %359 = vector.broadcast %357 : vector<1x256xf32> to vector<4x256xf32>
    %360 = arith.mulf %358, %359 : vector<4x256xf32>
    %361 = arith.addf %355, %360 : vector<4x256xf32>
    %362 = vector.broadcast %5 : vector<4x1xf32> to vector<4x256xf32>
    %363 = arith.addf %361, %362 : vector<4x256xf32>
    %364 = vector.broadcast %6 : vector<4x1xf32> to vector<4x256xf32>
    %365 = arith.mulf %363, %364 : vector<4x256xf32>
    %366 = arith.addf %214, %365 : vector<4x256xf32>
    %cst_82 = arith.constant dense<0.000000e+00> : vector<256xf32>
    %367 = vector.multi_reduction <add>, %366, %cst_82 [0] : vector<4x256xf32> to vector<256xf32>
    %368 = vector.shape_cast %367 : vector<256xf32> to vector<1x256xf32>
    %cst_83 = arith.constant 4.000000e+00 : f32
    %369 = vector.broadcast %cst_83 : f32 to vector<1x256xf32>
    %370 = arith.divf %368, %369 : vector<1x256xf32>
    %371 = vector.broadcast %370 : vector<1x256xf32> to vector<4x256xf32>
    %372 = arith.subf %366, %371 : vector<4x256xf32>
    %373 = arith.mulf %372, %372 : vector<4x256xf32>
    %cst_84 = arith.constant dense<0.000000e+00> : vector<256xf32>
    %374 = vector.multi_reduction <add>, %373, %cst_84 [0] : vector<4x256xf32> to vector<256xf32>
    %375 = vector.shape_cast %374 : vector<256xf32> to vector<1x256xf32>
    %cst_85 = arith.constant 4.000000e+00 : f32
    %376 = vector.broadcast %cst_85 : f32 to vector<1x256xf32>
    %377 = arith.divf %375, %376 : vector<1x256xf32>
    %cst_86 = arith.constant 9.99999997E-7 : f32
    %378 = vector.broadcast %cst_86 : f32 to vector<1x256xf32>
    %379 = arith.addf %377, %378 : vector<1x256xf32>
    %380 = math.rsqrt %379 : vector<1x256xf32>
    %381 = vector.broadcast %380 : vector<1x256xf32> to vector<4x256xf32>
    %382 = arith.mulf %372, %381 : vector<4x256xf32>
    %383 = vector.extract_strided_slice %0 {offsets = [0, 4], sizes = [8, 1], strides = [1, 1]} : vector<8x37xf32> to vector<8x1xf32>
    %384 = vector.extract_strided_slice %382 {offsets = [0, 0], sizes = [1, 256], strides = [1, 1]} : vector<4x256xf32> to vector<1x256xf32>
    %385 = vector.broadcast %383 : vector<8x1xf32> to vector<8x256xf32>
    %386 = vector.broadcast %384 : vector<1x256xf32> to vector<8x256xf32>
    %387 = arith.mulf %385, %386 : vector<8x256xf32>
    %388 = vector.extract_strided_slice %0 {offsets = [0, 5], sizes = [8, 1], strides = [1, 1]} : vector<8x37xf32> to vector<8x1xf32>
    %389 = vector.extract_strided_slice %382 {offsets = [1, 0], sizes = [1, 256], strides = [1, 1]} : vector<4x256xf32> to vector<1x256xf32>
    %390 = vector.broadcast %388 : vector<8x1xf32> to vector<8x256xf32>
    %391 = vector.broadcast %389 : vector<1x256xf32> to vector<8x256xf32>
    %392 = arith.mulf %390, %391 : vector<8x256xf32>
    %393 = arith.addf %387, %392 : vector<8x256xf32>
    %394 = vector.extract_strided_slice %0 {offsets = [0, 6], sizes = [8, 1], strides = [1, 1]} : vector<8x37xf32> to vector<8x1xf32>
    %395 = vector.extract_strided_slice %382 {offsets = [2, 0], sizes = [1, 256], strides = [1, 1]} : vector<4x256xf32> to vector<1x256xf32>
    %396 = vector.broadcast %394 : vector<8x1xf32> to vector<8x256xf32>
    %397 = vector.broadcast %395 : vector<1x256xf32> to vector<8x256xf32>
    %398 = arith.mulf %396, %397 : vector<8x256xf32>
    %399 = arith.addf %393, %398 : vector<8x256xf32>
    %400 = vector.extract_strided_slice %0 {offsets = [0, 7], sizes = [8, 1], strides = [1, 1]} : vector<8x37xf32> to vector<8x1xf32>
    %401 = vector.extract_strided_slice %382 {offsets = [3, 0], sizes = [1, 256], strides = [1, 1]} : vector<4x256xf32> to vector<1x256xf32>
    %402 = vector.broadcast %400 : vector<8x1xf32> to vector<8x256xf32>
    %403 = vector.broadcast %401 : vector<1x256xf32> to vector<8x256xf32>
    %404 = arith.mulf %402, %403 : vector<8x256xf32>
    %405 = arith.addf %399, %404 : vector<8x256xf32>
    %406 = vector.broadcast %3 : vector<8x1xf32> to vector<8x256xf32>
    %407 = arith.addf %405, %406 : vector<8x256xf32>
    %408 = vector.extract_strided_slice %407 {offsets = [0, 0], sizes = [4, 256], strides = [1, 1]} : vector<8x256xf32> to vector<4x256xf32>
    %409 = vector.extract_strided_slice %407 {offsets = [4, 0], sizes = [4, 256], strides = [1, 1]} : vector<8x256xf32> to vector<4x256xf32>
    %410 = arith.mulf %408, %409 : vector<4x256xf32>
    %411 = vector.extract_strided_slice %0 {offsets = [0, 16], sizes = [4, 1], strides = [1, 1]} : vector<8x37xf32> to vector<4x1xf32>
    %412 = vector.extract_strided_slice %410 {offsets = [0, 0], sizes = [1, 256], strides = [1, 1]} : vector<4x256xf32> to vector<1x256xf32>
    %413 = vector.broadcast %411 : vector<4x1xf32> to vector<4x256xf32>
    %414 = vector.broadcast %412 : vector<1x256xf32> to vector<4x256xf32>
    %415 = arith.mulf %413, %414 : vector<4x256xf32>
    %416 = vector.extract_strided_slice %0 {offsets = [0, 17], sizes = [4, 1], strides = [1, 1]} : vector<8x37xf32> to vector<4x1xf32>
    %417 = vector.extract_strided_slice %410 {offsets = [1, 0], sizes = [1, 256], strides = [1, 1]} : vector<4x256xf32> to vector<1x256xf32>
    %418 = vector.broadcast %416 : vector<4x1xf32> to vector<4x256xf32>
    %419 = vector.broadcast %417 : vector<1x256xf32> to vector<4x256xf32>
    %420 = arith.mulf %418, %419 : vector<4x256xf32>
    %421 = arith.addf %415, %420 : vector<4x256xf32>
    %422 = vector.extract_strided_slice %0 {offsets = [0, 18], sizes = [4, 1], strides = [1, 1]} : vector<8x37xf32> to vector<4x1xf32>
    %423 = vector.extract_strided_slice %410 {offsets = [2, 0], sizes = [1, 256], strides = [1, 1]} : vector<4x256xf32> to vector<1x256xf32>
    %424 = vector.broadcast %422 : vector<4x1xf32> to vector<4x256xf32>
    %425 = vector.broadcast %423 : vector<1x256xf32> to vector<4x256xf32>
    %426 = arith.mulf %424, %425 : vector<4x256xf32>
    %427 = arith.addf %421, %426 : vector<4x256xf32>
    %428 = vector.extract_strided_slice %0 {offsets = [0, 19], sizes = [4, 1], strides = [1, 1]} : vector<8x37xf32> to vector<4x1xf32>
    %429 = vector.extract_strided_slice %410 {offsets = [3, 0], sizes = [1, 256], strides = [1, 1]} : vector<4x256xf32> to vector<1x256xf32>
    %430 = vector.broadcast %428 : vector<4x1xf32> to vector<4x256xf32>
    %431 = vector.broadcast %429 : vector<1x256xf32> to vector<4x256xf32>
    %432 = arith.mulf %430, %431 : vector<4x256xf32>
    %433 = arith.addf %427, %432 : vector<4x256xf32>
    %434 = vector.broadcast %7 : vector<4x1xf32> to vector<4x256xf32>
    %435 = arith.addf %433, %434 : vector<4x256xf32>
    %436 = vector.broadcast %8 : vector<4x1xf32> to vector<4x256xf32>
    %437 = arith.mulf %435, %436 : vector<4x256xf32>
    %438 = arith.addf %366, %437 : vector<4x256xf32>
    %c0_87 = arith.constant 0 : index
    %c0_88 = arith.constant 0 : index
    %c0_89 = arith.constant 0 : index
    %439 = vector.load %arg3[%c0_87, %c0_88, %c0_89] : memref<1x4x256xf32, #tpu.memory_space<vmem>>, vector<1x4x256xf32>
    %440 = vector.shape_cast %439 : vector<1x4x256xf32> to vector<4x256xf32>
    %441 = vector.shape_cast %438 : vector<4x256xf32> to vector<1x4x256xf32>
    tpu.vector_store %arg3[%c0_87, %c0_88, %c0_89], %441 {strides = array<i32>} : memref<1x4x256xf32, #tpu.memory_space<vmem>>, vector<1x4x256xf32>,
    return
  }
  func.func @transform_0(%arg0: i32) -> (i32, i32, i32) {
    %c0_i32 = arith.constant 0 : i32
    %c0_i32_0 = arith.constant 0 : i32
    %c0_i32_1 = arith.constant 0 : i32
    return %arg0, %c0_i32, %c0_i32_0 : i32, i32, i32
  }
  func.func @transform_1(%arg0: i32) -> (i32, i32) {
    %c0_i32 = arith.constant 0 : i32
    %c0_i32_0 = arith.constant 0 : i32
    %c0_i32_1 = arith.constant 0 : i32
    return %c0_i32, %c0_i32_0 : i32, i32
  }
  func.func @transform_2(%arg0: i32) -> (i32, i32, i32) {
    %c0_i32 = arith.constant 0 : i32
    %c0_i32_0 = arith.constant 0 : i32
    %c0_i32_1 = arith.constant 0 : i32
    return %arg0, %c0_i32, %c0_i32_0 : i32, i32, i32
  }
}

</mosaic_0001>

<llo_original>
// kernel: tpu_custom_call.1
$region0: #{tpu_custom_call.1}
  #allocation0 [shape = 'u32[]', space=smem, size = 0x4, offset = 0x4, fixed_abs, tag = 'smem constant byte address 0x4 - core index']
  #allocation1 [shape = 'u32[72,128]{1,0:T(1,128)}', space=vmem, size = 0x9000, scoped, tag = 'internal scratch']
  %s0 = inlined_call_operand.hbm [shape: f32[2,4,256], index: 0, kind: input, shape index: {}]
  %s1 = inlined_call_operand.hbm [shape: f32[8,37], index: 1, kind: input, shape index: {}]
  %s2 = inlined_call_operand.hbm [shape: f32[2,4,256], index: 2, kind: output, shape index: {}]
  %s3 = sld [smem:[#allocation0]]
  $region49: #{tpu_custom_call.1} parent=0
    _
  %s5 = ssub.s32 1, %s3
  %s6 = scalar_select 0, %s5, %s3
  $region1: #{tpu_custom_call.1} parent=0
    #allocation2 [shape = 'u8[8192]{0}', space=vmem, size = 0x2000, scoped, tag = 'input window, operand 0']
    #allocation3 [shape = 's32[2]{0}', space=sflag, size = 0x8, scoped, tag = 'scoped memory for tpu_custom_call.1']
    #allocation4 [shape = 's32[2]{0}', space=sflag, size = 0x8, scoped, tag = 'scoped memory for tpu_custom_call.1']
    #allocation5 [shape = 'u8[4096]{0}', space=vmem, size = 0x1000, scoped, tag = 'input window, operand 1, single buffered']
    #allocation6 [shape = 's32[1]{0}', space=sflag, size = 0x4, scoped, tag = 'scoped memory for tpu_custom_call.1']
    #allocation7 [shape = 'u8[8192]{0}', space=vmem, size = 0x2000, scoped, tag = 'output window, operand 0']
    %7 = vsyncpa [#allocation3], 0
    %s8 = scalar_lea.sflag [#allocation3], 1
    %9 = vsyncpa %s8, 0
    %10 = vsyncpa [#allocation6], 0
    %11 = vsyncpa [#allocation4], 0
    %s12 = scalar_lea.sflag [#allocation4], 1
    %13 = vsyncpa %s12, 0
    loop: start=0, step=1, limit=4
    $region2: #{tpu_custom_call.1} parent=1 // loop_pre_header
      _
    $region3: #{tpu_custom_call.1} parent=1 // loop_header
      %s15 = sphi 0, %s19
      %p16 = scmp.ge.s32.totalorder %s15, 4
      %s25 = sphi 0, %s27
      %s28 = sphi 0, %s25
      %s29 = sphi 0, %s28
      %s45 = sphi 0, %s29
      %s49 = sphi 0, %s49
      %s51 = sphi 0, %s49
      %s52 = sphi 0, %s51
      %s66 = sphi 0, %s52
      %s72 = sphi 0, %s74
      %s75 = sphi 0, %s72
      %s76 = sphi 0, %s75
      %s92 = sphi 0, %s76
    $region4: #{tpu_custom_call.1} parent=1 // loop_header_branch
      %18 = sbr.rel (%p16) target = $region8
    $region5: #{tpu_custom_call.1} parent=1 // loop_body
      %s20 = ssub.s32 %s15, 1
      %s21 = ssub.s32 %s15, 2
      %s22 = sadd.s32 %s15, 1
      %s23 = ssub.s32 %s15, %s22
      %p24 = scmp.eq.s32.totalorder %s23, 0
      %s26 = sadd.s32 %s25, 1
      %s27 = scalar_select %p24, %s25, %s26
      %p30 = pneg %p24
      %p31 = scmp.eq.s32.totalorder %s15, 1
      %p32 = por %p30, %p31
      %p33 = scmp.ne.s32.totalorder %s25, %s28
      %p34 = scmp.eq.s32.totalorder %s15, 0
      %p35 = por %p33, %p34
      %p36 = scmp.ne.s32.totalorder %s25, %s28
      %p37 = scmp.eq.s32.totalorder %s20, 1
      %p38 = por %p36, %p37
      %p39 = scmp.ne.s32.totalorder %s28, %s29
      %p40 = scmp.eq.s32.totalorder %s20, 0
      %p41 = por %p39, %p40
      %p42 = scmp.ne.s32.totalorder %s28, %s29
      %p43 = scmp.eq.s32.totalorder %s21, 1
      %p44 = por %p42, %p43
      %p46 = scmp.ne.s32.totalorder %s29, %s45
      %p47 = scmp.eq.s32.totalorder %s21, 0
      %p48 = por %p46, %p47
      %s50 = sadd.s32 %s49, 1
      %p53 = scmp.eq.s32.totalorder %s15, 1
      %p54 = scmp.ne.s32.totalorder %s49, %s51
      %p55 = scmp.eq.s32.totalorder %s15, 0
      %p56 = por %p54, %p55
      %p57 = scmp.ne.s32.totalorder %s49, %s51
      %p58 = scmp.eq.s32.totalorder %s20, 1
      %p59 = por %p57, %p58
      %p60 = scmp.ne.s32.totalorder %s51, %s52
      %p61 = scmp.eq.s32.totalorder %s20, 0
      %p62 = por %p60, %p61
      %p63 = scmp.ne.s32.totalorder %s51, %s52
      %p64 = scmp.eq.s32.totalorder %s21, 1
      %p65 = por %p63, %p64
      %p67 = scmp.ne.s32.totalorder %s52, %s66
      %p68 = scmp.eq.s32.totalorder %s21, 0
      %p69 = por %p67, %p68
      %s70 = ssub.s32 %s15, %s22
      %p71 = scmp.eq.s32.totalorder %s70, 0
      %s73 = sadd.s32 %s72, 1
      %s74 = scalar_select %p71, %s72, %s73
      %p77 = pneg %p71
      %p78 = scmp.eq.s32.totalorder %s15, 1
      %p79 = por %p77, %p78
      %p80 = scmp.ne.s32.totalorder %s72, %s75
      %p81 = scmp.eq.s32.totalorder %s15, 0
      %p82 = por %p80, %p81
      %p83 = scmp.ne.s32.totalorder %s72, %s75
      %p84 = scmp.eq.s32.totalorder %s20, 1
      %p85 = por %p83, %p84
      %p86 = scmp.ne.s32.totalorder %s75, %s76
      %p87 = scmp.eq.s32.totalorder %s20, 0
      %p88 = por %p86, %p87
      %p89 = scmp.ne.s32.totalorder %s75, %s76
      %p90 = scmp.eq.s32.totalorder %s21, 1
      %p91 = por %p89, %p90
      %p93 = scmp.ne.s32.totalorder %s76, %s92
      %p94 = scmp.eq.s32.totalorder %s21, 0
      %p95 = por %p93, %p94
      %p96 = scmp.le.s32.totalorder 1, %s15
      %p97 = scmp.lt.s32.totalorder %s15, 3
      %p98 = pnand %p96, %p97
      %p99 = pneg %p98
      // Predicated region
      $region9: #{tpu_custom_call.1} parent=5 // pred_check
        _
      $region10: #{tpu_custom_call.1} parent=5 // pred_check_branch
        %101 = sbr.rel (%p98) target = $region12
      $region11: #{tpu_custom_call.1} parent=5 // pred_region
        %s102 = ssub.s32 %s15, 1
        // Predicated region
        $region13: #{tpu_custom_call.1} parent=11 // pred_check
          %p103 = pneg %p62
        $region14: #{tpu_custom_call.1} parent=11 // pred_check_branch
          %105 = sbr.rel (%p103) target = $region16
        $region15: #{tpu_custom_call.1} parent=11 // pred_region
          %107 = vsyncadd [#allocation6], 0
          %s109 = sshll.u32 %s1, 4
          %s110 = int_to_ptr.hbm [resolvable:$true] %s109
          %s111 = sshll.u32 [#allocation5], 4
          %s112 = int_to_ptr.vmem [resolvable:$true] %s111
          %114 = dma.hbm_to_vmem [thread:$0]  %s110, 128, %s112, [#allocation6]
        $region16: #{tpu_custom_call.1} parent=11 // pred_fallthru
          _
      $region12: #{tpu_custom_call.1} parent=5 // pred_fallthru
        _
      %p115 = scmp.lt.s32.totalorder %s15, 2
      // Predicated region
      $region17: #{tpu_custom_call.1} parent=5 // pred_check
        %p116 = pneg %p115
      $region18: #{tpu_custom_call.1} parent=5 // pred_check_branch
        %118 = sbr.rel (%p116) target = $region20
      $region19: #{tpu_custom_call.1} parent=5 // pred_region
        // Predicated region
        $region21: #{tpu_custom_call.1} parent=19 // pred_check
          %p119 = pneg %p35
        $region22: #{tpu_custom_call.1} parent=19 // pred_check_branch
          %121 = sbr.rel (%p119) target = $region24
        $region23: #{tpu_custom_call.1} parent=19 // pred_region
          %s122 = sand.u32 %s25, 1
          %s123 = scalar_lea.sflag [#allocation3], %s122
          %s124 = sand.u32 %s25, 1
          %s125 = smul.addr %s124, 8
          %s126 = scalar_lea.vmem [#allocation2], %s125
          %128 = vsyncadd %s123, 0
          %s129 = smul.addr %s15, 2
          %s130 = smul.addr %s129, 4
          %s131 = scalar_lea.hbm %s0, %s130
          %s133 = sshll.u32 %s131, 4
          %s134 = int_to_ptr.hbm [resolvable:$true] %s133
          %s135 = sshll.u32 %s126, 4
          %s136 = int_to_ptr.vmem [resolvable:$true] %s135
          %138 = dma.hbm_to_vmem [thread:$0]  %s134, 128, %s136, %s123
        $region24: #{tpu_custom_call.1} parent=19 // pred_fallthru
          _
      $region20: #{tpu_custom_call.1} parent=5 // pred_fallthru
        _
      %p139 = scmp.le.s32.totalorder 1, %s15
      %p140 = scmp.lt.s32.totalorder %s15, 3
      %p141 = pnand %p139, %p140
      %p142 = pneg %p141
      // Predicated region
      $region25: #{tpu_custom_call.1} parent=5 // pred_check
        _
      $region26: #{tpu_custom_call.1} parent=5 // pred_check_branch
        %144 = sbr.rel (%p141) target = $region28
      $region27: #{tpu_custom_call.1} parent=5 // pred_region
        %s145 = ssub.s32 %s15, 1
        %s146 = sand.u32 %s28, 1
        %s147 = scalar_lea.sflag [#allocation3], %s146
        %s148 = sand.u32 %s28, 1
        %s149 = smul.addr %s148, 8
        %s150 = scalar_lea.vmem [#allocation2], %s149
        // Predicated region
        $region29: #{tpu_custom_call.1} parent=27 // pred_check
          %p151 = pneg %p41
        $region30: #{tpu_custom_call.1} parent=27 // pred_check_branch
          %153 = sbr.rel (%p151) target = $region32
        $region31: #{tpu_custom_call.1} parent=27 // pred_region
          %155 = dma.done %s147, 128
        $region32: #{tpu_custom_call.1} parent=27 // pred_fallthru
          _
        // Predicated region
        $region33: #{tpu_custom_call.1} parent=27 // pred_check
          %p156 = pneg %p62
        $region34: #{tpu_custom_call.1} parent=27 // pred_check_branch
          %158 = sbr.rel (%p156) target = $region36
        $region35: #{tpu_custom_call.1} parent=27 // pred_region
          %160 = dma.done [#allocation6], 128
        $region36: #{tpu_custom_call.1} parent=27 // pred_fallthru
          _
        %s161 = sand.u32 %s28, 1
        %s162 = scalar_lea.sflag [#allocation3], %s161
        %s163 = sand.u32 %s28, 1
        %s164 = smul.addr %s163, 8
        %s165 = scalar_lea.vmem [#allocation2], %s164
        %p166 = pneg %p41
        %p167 = pneg %p38
        %p168 = pneg %p62
        %p169 = pneg %p59
        %p170 = pneg %p88
        %p171 = pneg %p85
        %s172 = sand.u32 %s75, 1
        %s173 = scalar_lea.sflag [#allocation4], %s172
        %s174 = sand.u32 %s75, 1
        %s175 = smul.addr %s174, 8
        %s176 = scalar_lea.vmem [#allocation7], %s175
        %v177 = vld [vmem:[#allocation5] sm:$0xff]
        %v178 = vlaneseq
        %v179 = vand.u32 %v178, 127
        %v180 = vadd.s32 %v179, 128
        %vm181 = vcmp.lt.s32.totalorder %v179, 0
        %v182 = vsub.s32 0, %v179
        %v183 = vsel %vm181, %v182, %v179
        %v184 = vshrl.u32 %v183, 4
        %v185 = vand.u32 %v183, 15
        %v186 = vsub.s32 0, %v184
        %v187 = vsel %vm181, %v186, %v184
        %vm188 = vcmp.lt.s32.totalorder %v180, 0
        %v189 = vsub.s32 0, %v180
        %v190 = vsel %vm188, %v189, %v180
        %v191 = vshrl.u32 %v190, 4
        %v192 = vand.u32 %v190, 15
        %v193 = vsub.s32 0, %v191
        %v194 = vsel %vm188, %v193, %v191
        %v195 = vmul.u32 %v187, 16
        %v196 = vmul.u32 %v194, 16
        %v197 = vsub.s32 %v179, %v195
        %v198 = vsub.s32 %v180, %v196
        %v199 = vadd.s32 %v187, 4294967295
        %v200 = vadd.s32 %v194, 4294967295
        %vm201 = vcmp.ge.s32.totalorder %v199, 0
        %vm202 = vcmp.ge.s32.totalorder %v200, 0
        %vm203 = vcmp.lt.s32.totalorder %v199, 16
        %vm204 = vcmp.lt.s32.totalorder %v200, 16
        %vm205 = vmand %vm201, %vm203
        %vm206 = vmand %vm202, %vm204
        %v207 = vadd.s32 %v197, 4294967295
        %v208 = vadd.s32 %v198, 4294967295
        %vm209 = vcmp.ge.s32.totalorder %v207, 0
        %vm210 = vcmp.ge.s32.totalorder %v208, 0
        %vm211 = vmand %vm205, %vm209
        %vm212 = vmand %vm206, %vm210
        %vm213 = vcmp.lt.s32.totalorder %v207, 16
        %vm214 = vcmp.lt.s32.totalorder %v208, 16
        %vm215 = vmand %vm211, %vm213
        %vm216 = vmand %vm212, %vm214
        %v217 = vsel %vm215, 1, 0
        %v218 = vsel %vm216, 1, 0
        %v219 = vcvt.s32.f32 %v217
        %v220 = vcvt.s32.f32 %v218
        %vm221 = vcmp.ge.s32.totalorder %v197, 0
        %vm222 = vcmp.ge.s32.totalorder %v198, 0
        %vm223 = vmand %vm205, %vm221
        %vm224 = vmand %vm206, %vm222
        %vm225 = vcmp.lt.s32.totalorder %v197, 16
        %vm226 = vcmp.lt.s32.totalorder %v198, 16
        %vm227 = vmand %vm223, %vm225
        %vm228 = vmand %vm224, %vm226
        %v229 = vsel %vm227, 1, 0
        %v230 = vsel %vm228, 1, 0
        %v231 = vcvt.s32.f32 %v229
        %v232 = vcvt.s32.f32 %v230
        %v233 = vadd.s32 %v197, 1
        %v234 = vadd.s32 %v198, 1
        %vm235 = vcmp.ge.s32.totalorder %v233, 0
        %vm236 = vcmp.ge.s32.totalorder %v234, 0
        %vm237 = vmand %vm205, %vm235
        %vm238 = vmand %vm206, %vm236
        %vm239 = vcmp.lt.s32.totalorder %v233, 16
        %vm240 = vcmp.lt.s32.totalorder %v234, 16
        %vm241 = vmand %vm237, %vm239
        %vm242 = vmand %vm238, %vm240
        %v243 = vsel %vm241, 1, 0
        %v244 = vsel %vm242, 1, 0
        %v245 = vcvt.s32.f32 %v243
        %v246 = vcvt.s32.f32 %v244
        %vm247 = vcmp.ge.s32.totalorder %v187, 0
        %vm248 = vcmp.ge.s32.totalorder %v194, 0
        %vm249 = vcmp.lt.s32.totalorder %v187, 16
        %vm250 = vcmp.lt.s32.totalorder %v194, 16
        %vm251 = vmand %vm247, %vm249
        %vm252 = vmand %vm248, %vm250
        %vm253 = vmand %vm251, %vm209
        %vm254 = vmand %vm252, %vm210
        %vm255 = vmand %vm253, %vm213
        %vm256 = vmand %vm254, %vm214
        %v257 = vsel %vm255, 1, 0
        %v258 = vsel %vm256, 1, 0
        %v259 = vcvt.s32.f32 %v257
        %v260 = vcvt.s32.f32 %v258
        %vm261 = vmand %vm251, %vm221
        %vm262 = vmand %vm252, %vm222
        %vm263 = vmand %vm261, %vm225
        %vm264 = vmand %vm262, %vm226
        %v265 = vsel %vm263, 1, 0
        %v266 = vsel %vm264, 1, 0
        %v267 = vcvt.s32.f32 %v265
        %v268 = vcvt.s32.f32 %v266
        %vm269 = vmand %vm251, %vm235
        %vm270 = vmand %vm252, %vm236
        %vm271 = vmand %vm269, %vm239
        %vm272 = vmand %vm270, %vm240
        %v273 = vsel %vm271, 1, 0
        %v274 = vsel %vm272, 1, 0
        %v275 = vcvt.s32.f32 %v273
        %v276 = vcvt.s32.f32 %v274
        %v277 = vadd.s32 %v187, 1
        %v278 = vadd.s32 %v194, 1
        %vm279 = vcmp.ge.s32.totalorder %v277, 0
        %vm280 = vcmp.ge.s32.totalorder %v278, 0
        %vm281 = vcmp.lt.s32.totalorder %v277, 16
        %vm282 = vcmp.lt.s32.totalorder %v278, 16
        %vm283 = vmand %vm279, %vm281
        %vm284 = vmand %vm280, %vm282
        %vm285 = vmand %vm283, %vm209
        %vm286 = vmand %vm284, %vm210
        %vm287 = vmand %vm285, %vm213
        %vm288 = vmand %vm286, %vm214
        %v289 = vsel %vm287, 1, 0
        %v290 = vsel %vm288, 1, 0
        %v291 = vcvt.s32.f32 %v289
        %v292 = vcvt.s32.f32 %v290
        %vm293 = vmand %vm283, %vm221
        %vm294 = vmand %vm284, %vm222
        %vm295 = vmand %vm293, %vm225
        %vm296 = vmand %vm294, %vm226
        %v297 = vsel %vm295, 1, 0
        %v298 = vsel %vm296, 1, 0
        %v299 = vcvt.s32.f32 %v297
        %v300 = vcvt.s32.f32 %v298
        %vm301 = vmand %vm283, %vm235
        %vm302 = vmand %vm284, %vm236
        %vm303 = vmand %vm301, %vm239
        %vm304 = vmand %vm302, %vm240
        %v305 = vsel %vm303, 1, 0
        %v306 = vsel %vm304, 1, 0
        %v307 = vcvt.s32.f32 %v305
        %v308 = vcvt.s32.f32 %v306
        %v309 = vld [vmem:[%s150] sm:$0xff]
        %311 = vst [vmem:[#allocation1] ss:$2 sm:$0xff] %v309
        %v312 = vld.sshfl [vmem:[#allocation1] sm:$0xff pattern:$0x75316420]
        %v313 = vld.sshfl [vmem:[#allocation1 + $0x8] sm:$0xff pattern:$0x75316420]
        %vm316 = vcmask 1043456
        %v317 = vsel %vm316, %v312, 0.0
        %v318 = vrot.slane %v317, 4
        %v319 = vadd.f32 %v317, %v318
        %v320 = vrot.slane %v319, 2
        %v321 = vadd.f32 %v319, %v320
        %v322 = vrot.slane %v321, 1
        %v323 = vadd.f32 %v321, %v322
        %v324 = vsel %vm316, %v313, 0.0
        %v325 = vrot.slane %v324, 4
        %v326 = vadd.f32 %v324, %v325
        %v327 = vrot.slane %v326, 2
        %v328 = vadd.f32 %v326, %v327
        %v329 = vrot.slane %v328, 1
        %v330 = vadd.f32 %v328, %v329
        %v331 = vrcp.pop 4.0
        %v332 = vmul.f32 4.0, %v331
        %v333 = vsub.f32 1.0, %v332
        %v334 = vmul.f32 %v331, %v333
        %v335 = vadd.f32 %v331, %v334
        %vm336 = vweird.f32 %v331
        %v337 = vsel %vm336, %v331, %v335
        %v338 = vmul.f32 %v323, %v337
        %v339 = vmul.f32 %v330, %v337
        %v342 = vrot.slane %v339, 4
        %v343 = vsel %vm316, %v338, %v342
        %v345 = vsub.f32 %v309, %v343
        %v346 = vmul.f32 %v345, %v345
        %348 = vst [vmem:[#allocation1] ss:$2 sm:$0xff] %v346
        %v349 = vld.sshfl [vmem:[#allocation1] sm:$0xff pattern:$0x75316420]
        %v350 = vld.sshfl [vmem:[#allocation1 + $0x8] sm:$0xff pattern:$0x75316420]
        %v353 = vsel %vm316, %v349, 0.0
        %v354 = vrot.slane %v353, 4
        %v355 = vadd.f32 %v353, %v354
        %v356 = vrot.slane %v355, 2
        %v357 = vadd.f32 %v355, %v356
        %v358 = vrot.slane %v357, 1
        %v359 = vadd.f32 %v357, %v358
        %v360 = vsel %vm316, %v350, 0.0
        %v361 = vrot.slane %v360, 4
        %v362 = vadd.f32 %v360, %v361
        %v363 = vrot.slane %v362, 2
        %v364 = vadd.f32 %v362, %v363
        %v365 = vrot.slane %v364, 1
        %v366 = vadd.f32 %v364, %v365
        %v367 = vmul.f32 %v359, %v337
        %v368 = vmul.f32 %v366, %v337
        %v369 = vadd.f32 %v367, 1e-06
        %v370 = vadd.f32 %v368, 1e-06
        %v371 = vrsqrt.pop %v369
        %v372 = vmul.f32 %v371, %v369
        %v373 = vmul.f32 %v372, %v371
        %v374 = vmul.f32 0.5, %v373
        %v375 = vsub.f32 1.5, %v374
        %v376 = vmul.f32 %v371, %v375
        %vm377 = vweird.f32 %v369
        %vm378 = vweird.f32 %v371
        %vm379 = vmor %vm377, %vm378
        %v380 = vsel %vm379, %v371, %v376
        %v381 = vrsqrt.pop %v370
        %v382 = vmul.f32 %v381, %v370
        %v383 = vmul.f32 %v382, %v381
        %v384 = vmul.f32 0.5, %v383
        %v385 = vsub.f32 1.5, %v384
        %v386 = vmul.f32 %v381, %v385
        %vm387 = vweird.f32 %v370
        %vm388 = vweird.f32 %v381
        %vm389 = vmor %vm387, %vm388
        %v390 = vsel %vm389, %v381, %v386
        %v393 = vrot.slane %v390, 4
        %v394 = vsel %vm316, %v380, %v393
        %v396 = vmul.f32 %v345, %v394
        %398 = vset.pattern.permute.xlu0 0
        %399 = vperm.xlu0 %398, %v177
        %v400 = vpop.permute.xlu0 %399
        %v403 = vperm.slane %v396, 0
        %v404 = vperm.slane %v396, 4
        %v407 = vperm.slane %v403, 0
        %v408 = vperm.slane %v404, 0
        %v409 = vmul.f32 %v400, %v407
        %v410 = vmul.f32 %v400, %v408
        %411 = vset.pattern.permute.xlu0 1
        %412 = vperm.xlu0 %411, %v177
        %v413 = vpop.permute.xlu0 %412
        %v415 = vperm.slane %v396, 1
        %v416 = vperm.slane %v396, 5
        %v419 = vperm.slane %v415, 1
        %v420 = vperm.slane %v416, 1
        %v421 = vmul.f32 %v413, %v419
        %v422 = vmul.f32 %v413, %v420
        %v423 = vadd.f32 %v409, %v421
        %v424 = vadd.f32 %v410, %v422
        %425 = vset.pattern.permute.xlu0 2
        %426 = vperm.xlu0 %425, %v177
        %v427 = vpop.permute.xlu0 %426
        %v429 = vperm.slane %v396, 2
        %v430 = vperm.slane %v396, 6
        %v433 = vperm.slane %v429, 2
        %v434 = vperm.slane %v430, 2
        %v435 = vmul.f32 %v427, %v433
        %v436 = vmul.f32 %v427, %v434
        %v437 = vadd.f32 %v423, %v435
        %v438 = vadd.f32 %v424, %v436
        %439 = vset.pattern.permute.xlu0 3
        %440 = vperm.xlu0 %439, %v177
        %v441 = vpop.permute.xlu0 %440
        %v443 = vperm.slane %v396, 3
        %v444 = vperm.slane %v396, 7
        %v447 = vperm.slane %v443, 3
        %v448 = vperm.slane %v444, 3
        %v449 = vmul.f32 %v441, %v447
        %v450 = vmul.f32 %v441, %v448
        %v451 = vadd.f32 %v437, %v449
        %v452 = vadd.f32 %v438, %v450
        %453 = vset.pattern.permute.xlu0 29
        %454 = vperm.xlu0 %453, %v177
        %v455 = vpop.permute.xlu0 %454
        %v457 = vadd.f32 %v451, %v455
        %v458 = vadd.f32 %v452, %v455
        %459 = vrot.lane.b32.xlu0 %v457, 17
        %v460 = vpop.permute.xlu0 %459
        %461 = vrot.lane.b32.xlu0 %v458, 17
        %v462 = vpop.permute.xlu0 %461
        %vm463 = vcmp.lt.s32.totalorder %v179, 17
        %v464 = vsel %vm463, %v460, %v462
        %v465 = vsel %vm463, %v462, %v460
        %466 = vset.pattern.permute.xlu0 20
        %467 = vperm.xlu0 %466, %v177
        %v468 = vpop.permute.xlu0 %467
        %v470 = vmul.f32 %v465, %v468
        %v471 = vmul.f32 %v464, %v468
        %v472 = vmul.f32 %v470, %v219
        %v473 = vmul.f32 %v471, %v220
        %474 = vrot.lane.b32.xlu0 %v457, 16
        %v475 = vpop.permute.xlu0 %474
        %476 = vrot.lane.b32.xlu0 %v458, 16
        %v477 = vpop.permute.xlu0 %476
        %vm478 = vcmp.lt.s32.totalorder %v179, 16
        %v479 = vsel %vm478, %v475, %v477
        %v480 = vsel %vm478, %v477, %v475
        %481 = vset.pattern.permute.xlu0 21
        %482 = vperm.xlu0 %481, %v177
        %v483 = vpop.permute.xlu0 %482
        %v485 = vmul.f32 %v480, %v483
        %v486 = vmul.f32 %v479, %v483
        %v487 = vmul.f32 %v485, %v231
        %v488 = vmul.f32 %v486, %v232
        %v489 = vadd.f32 %v472, %v487
        %v490 = vadd.f32 %v473, %v488
        %491 = vrot.lane.b32.xlu0 %v457, 15
        %v492 = vpop.permute.xlu0 %491
        %493 = vrot.lane.b32.xlu0 %v458, 15
        %v494 = vpop.permute.xlu0 %493
        %vm495 = vcmp.lt.s32.totalorder %v179, 15
        %v496 = vsel %vm495, %v492, %v494
        %v497 = vsel %vm495, %v494, %v492
        %498 = vset.pattern.permute.xlu0 22
        %499 = vperm.xlu0 %498, %v177
        %v500 = vpop.permute.xlu0 %499
        %v502 = vmul.f32 %v497, %v500
        %v503 = vmul.f32 %v496, %v500
        %v504 = vmul.f32 %v502, %v245
        %v505 = vmul.f32 %v503, %v246
        %v506 = vadd.f32 %v489, %v504
        %v507 = vadd.f32 %v490, %v505
        %508 = vrot.lane.b32.xlu0 %v457, 1
        %v509 = vpop.permute.xlu0 %508
        %510 = vrot.lane.b32.xlu0 %v458, 1
        %v511 = vpop.permute.xlu0 %510
        %vm512 = vcmp.lt.s32.totalorder %v179, 1
        %v513 = vsel %vm512, %v509, %v511
        %v514 = vsel %vm512, %v511, %v509
        %515 = vset.pattern.permute.xlu0 23
        %516 = vperm.xlu0 %515, %v177
        %v517 = vpop.permute.xlu0 %516
        %v519 = vmul.f32 %v514, %v517
        %v520 = vmul.f32 %v513, %v517
        %v521 = vmul.f32 %v519, %v259
        %v522 = vmul.f32 %v520, %v260
        %v523 = vadd.f32 %v506, %v521
        %v524 = vadd.f32 %v507, %v522
        %525 = vset.pattern.permute.xlu0 24
        %526 = vperm.xlu0 %525, %v177
        %v527 = vpop.permute.xlu0 %526
        %v529 = vmul.f32 %v457, %v527
        %v530 = vmul.f32 %v458, %v527
        %v531 = vmul.f32 %v529, %v267
        %v532 = vmul.f32 %v530, %v268
        %v533 = vadd.f32 %v523, %v531
        %v534 = vadd.f32 %v524, %v532
        %535 = vrot.lane.b32.xlu0 %v457, 127
        %v536 = vpop.permute.xlu0 %535
        %537 = vrot.lane.b32.xlu0 %v458, 127
        %v538 = vpop.permute.xlu0 %537
        %vm539 = vcmp.lt.s32.totalorder %v179, 127
        %v540 = vsel %vm539, %v536, %v538
        %v541 = vsel %vm539, %v538, %v536
        %542 = vset.pattern.permute.xlu0 25
        %543 = vperm.xlu0 %542, %v177
        %v544 = vpop.permute.xlu0 %543
        %v546 = vmul.f32 %v540, %v544
        %v547 = vmul.f32 %v541, %v544
        %v548 = vmul.f32 %v546, %v275
        %v549 = vmul.f32 %v547, %v276
        %v550 = vadd.f32 %v533, %v548
        %v551 = vadd.f32 %v534, %v549
        %552 = vrot.lane.b32.xlu0 %v457, 113
        %v553 = vpop.permute.xlu0 %552
        %554 = vrot.lane.b32.xlu0 %v458, 113
        %v555 = vpop.permute.xlu0 %554
        %vm556 = vcmp.lt.s32.totalorder %v179, 113
        %v557 = vsel %vm556, %v553, %v555
        %v558 = vsel %vm556, %v555, %v553
        %559 = vset.pattern.permute.xlu0 26
        %560 = vperm.xlu0 %559, %v177
        %v561 = vpop.permute.xlu0 %560
        %v563 = vmul.f32 %v557, %v561
        %v564 = vmul.f32 %v558, %v561
        %v565 = vmul.f32 %v563, %v291
        %v566 = vmul.f32 %v564, %v292
        %v567 = vadd.f32 %v550, %v565
        %v568 = vadd.f32 %v551, %v566
        %569 = vrot.lane.b32.xlu0 %v457, 112
        %v570 = vpop.permute.xlu0 %569
        %571 = vrot.lane.b32.xlu0 %v458, 112
        %v572 = vpop.permute.xlu0 %571
        %vm573 = vcmp.lt.s32.totalorder %v179, 112
        %v574 = vsel %vm573, %v570, %v572
        %v575 = vsel %vm573, %v572, %v570
        %576 = vset.pattern.permute.xlu0 27
        %577 = vperm.xlu0 %576, %v177
        %v578 = vpop.permute.xlu0 %577
        %v580 = vmul.f32 %v574, %v578
        %v581 = vmul.f32 %v575, %v578
        %v582 = vmul.f32 %v580, %v299
        %v583 = vmul.f32 %v581, %v300
        %v584 = vadd.f32 %v567, %v582
        %v585 = vadd.f32 %v568, %v583
        %586 = vrot.lane.b32.xlu0 %v457, 111
        %v587 = vpop.permute.xlu0 %586
        %588 = vrot.lane.b32.xlu0 %v458, 111
        %v589 = vpop.permute.xlu0 %588
        %vm590 = vcmp.lt.s32.totalorder %v179, 111
        %v591 = vsel %vm590, %v587, %v589
        %v592 = vsel %vm590, %v589, %v587
        %593 = vset.pattern.permute.xlu0 28
        %594 = vperm.xlu0 %593, %v177
        %v595 = vpop.permute.xlu0 %594
        %v597 = vmul.f32 %v591, %v595
        %v598 = vmul.f32 %v592, %v595
        %v599 = vmul.f32 %v597, %v307
        %v600 = vmul.f32 %v598, %v308
        %v601 = vadd.f32 %v584, %v599
        %v602 = vadd.f32 %v585, %v600
        %603 = vset.pattern.permute.xlu0 30
        %604 = vperm.xlu0 %603, %v177
        %v605 = vpop.permute.xlu0 %604
        %v607 = vadd.f32 %v601, %v605
        %v608 = vadd.f32 %v602, %v605
        %v611 = vrot.slane %v607, 4
        %v612 = vrot.slane %v608, 4
        %v615 = vmul.f32 %v607, %v611
        %v616 = vmul.f32 %v608, %v612
        %v617 = vsel %vm316, %v615, 0.0
        %v618 = vsel %vm316, %v616, 0.0
        %v619 = vadd.f32 %v617, %v618
        %620 = vadd.xlane.f32.xlu0 %v619
        %v621 = vpop.xlane.xlu0 %620
        %v622 = vrcp.pop 256.0
        %v623 = vmul.f32 256.0, %v622
        %v624 = vsub.f32 1.0, %v623
        %v625 = vmul.f32 %v622, %v624
        %v626 = vadd.f32 %v622, %v625
        %vm627 = vweird.f32 %v622
        %v628 = vsel %vm627, %v622, %v626
        %v629 = vmul.f32 %v621, %v628
        %v630 = vperm.slane %v629, 0
        %v631 = vmul.f32 %v177, %v630
        %v632 = vperm.slane %v629, 1
        %v633 = vmul.f32 %v177, %v632
        %635 = vrot.lane.b32.xlu0 %v633, 127
        %v636 = vpop.permute.xlu0 %635
        %v638 = vadd.f32 %v631, %v636
        %v639 = vperm.slane %v629, 2
        %v640 = vmul.f32 %v177, %v639
        %642 = vrot.lane.b32.xlu0 %v640, 126
        %v643 = vpop.permute.xlu0 %642
        %v645 = vadd.f32 %v638, %v643
        %v646 = vperm.slane %v629, 3
        %v647 = vmul.f32 %v177, %v646
        %649 = vrot.lane.b32.xlu0 %v647, 125
        %v650 = vpop.permute.xlu0 %649
        %v652 = vadd.f32 %v645, %v650
        %653 = vrot.lane.b32.xlu0 %v177, 104
        %v654 = vpop.permute.xlu0 %653
        %v656 = vadd.f32 %v652, %v654
        %658 = vset.pattern.permute.xlu0 8
        %659 = vperm.xlu0 %658, %v656
        %v660 = vpop.permute.xlu0 %659
        %v662 = vmul.f32 %v615, %v660
        %v663 = vmul.f32 %v616, %v660
        %664 = vset.pattern.permute.xlu0 12
        %665 = vperm.xlu0 %664, %v177
        %v666 = vpop.permute.xlu0 %665
        %v668 = vperm.slane %v662, 0
        %v669 = vperm.slane %v663, 0
        %v670 = vmul.f32 %v666, %v668
        %v671 = vmul.f32 %v666, %v669
        %672 = vset.pattern.permute.xlu0 13
        %673 = vperm.xlu0 %672, %v177
        %v674 = vpop.permute.xlu0 %673
        %v676 = vperm.slane %v662, 1
        %v677 = vperm.slane %v663, 1
        %v678 = vmul.f32 %v674, %v676
        %v679 = vmul.f32 %v674, %v677
        %v680 = vadd.f32 %v670, %v678
        %v681 = vadd.f32 %v671, %v679
        %682 = vset.pattern.permute.xlu0 14
        %683 = vperm.xlu0 %682, %v177
        %v684 = vpop.permute.xlu0 %683
        %v686 = vperm.slane %v662, 2
        %v687 = vperm.slane %v663, 2
        %v688 = vmul.f32 %v684, %v686
        %v689 = vmul.f32 %v684, %v687
        %v690 = vadd.f32 %v680, %v688
        %v691 = vadd.f32 %v681, %v689
        %692 = vset.pattern.permute.xlu0 15
        %693 = vperm.xlu0 %692, %v177
        %v694 = vpop.permute.xlu0 %693
        %v696 = vperm.slane %v662, 3
        %v697 = vperm.slane %v663, 3
        %v698 = vmul.f32 %v694, %v696
        %v699 = vmul.f32 %v694, %v697
        %v700 = vadd.f32 %v690, %v698
        %v701 = vadd.f32 %v691, %v699
        %702 = vset.pattern.permute.xlu0 33
        %703 = vperm.xlu0 %702, %v177
        %v704 = vpop.permute.xlu0 %703
        %v706 = vadd.f32 %v700, %v704
        %v707 = vadd.f32 %v701, %v704
        %708 = vset.pattern.permute.xlu0 34
        %709 = vperm.xlu0 %708, %v177
        %v710 = vpop.permute.xlu0 %709
        %v712 = vmul.f32 %v706, %v710
        %v713 = vmul.f32 %v707, %v710
        %v716 = vrot.slane %v713, 4
        %v717 = vsel %vm316, %v712, %v716
        %v719 = vadd.f32 %v309, %v717
        %721 = vst [vmem:[#allocation1] ss:$2 sm:$0xff] %v719
        %v722 = vld.sshfl [vmem:[#allocation1] sm:$0xff pattern:$0x75316420]
        %v723 = vld.sshfl [vmem:[#allocation1 + $0x8] sm:$0xff pattern:$0x75316420]
        %v726 = vsel %vm316, %v722, 0.0
        %v727 = vrot.slane %v726, 4
        %v728 = vadd.f32 %v726, %v727
        %v729 = vrot.slane %v728, 2
        %v730 = vadd.f32 %v728, %v729
        %v731 = vrot.slane %v730, 1
        %v732 = vadd.f32 %v730, %v731
        %v733 = vsel %vm316, %v723, 0.0
        %v734 = vrot.slane %v733, 4
        %v735 = vadd.f32 %v733, %v734
        %v736 = vrot.slane %v735, 2
        %v737 = vadd.f32 %v735, %v736
        %v738 = vrot.slane %v737, 1
        %v739 = vadd.f32 %v737, %v738
        %v740 = vmul.f32 %v732, %v337
        %v741 = vmul.f32 %v739, %v337
        %v744 = vrot.slane %v741, 4
        %v745 = vsel %vm316, %v740, %v744
        %v747 = vsub.f32 %v719, %v745
        %v748 = vmul.f32 %v747, %v747
        %750 = vst [vmem:[#allocation1] ss:$2 sm:$0xff] %v748
        %v751 = vld.sshfl [vmem:[#allocation1] sm:$0xff pattern:$0x75316420]
        %v752 = vld.sshfl [vmem:[#allocation1 + $0x8] sm:$0xff pattern:$0x75316420]
        %v755 = vsel %vm316, %v751, 0.0
        %v756 = vrot.slane %v755, 4
        %v757 = vadd.f32 %v755, %v756
        %v758 = vrot.slane %v757, 2
        %v759 = vadd.f32 %v757, %v758
        %v760 = vrot.slane %v759, 1
        %v761 = vadd.f32 %v759, %v760
        %v762 = vsel %vm316, %v752, 0.0
        %v763 = vrot.slane %v762, 4
        %v764 = vadd.f32 %v762, %v763
        %v765 = vrot.slane %v764, 2
        %v766 = vadd.f32 %v764, %v765
        %v767 = vrot.slane %v766, 1
        %v768 = vadd.f32 %v766, %v767
        %v769 = vmul.f32 %v761, %v337
        %v770 = vmul.f32 %v768, %v337
        %v771 = vadd.f32 %v769, 1e-06
        %v772 = vadd.f32 %v770, 1e-06
        %v773 = vrsqrt.pop %v771
        %v774 = vmul.f32 %v773, %v771
        %v775 = vmul.f32 %v774, %v773
        %v776 = vmul.f32 0.5, %v775
        %v777 = vsub.f32 1.5, %v776
        %v778 = vmul.f32 %v773, %v777
        %vm779 = vweird.f32 %v771
        %vm780 = vweird.f32 %v773
        %vm781 = vmor %vm779, %vm780
        %v782 = vsel %vm781, %v773, %v778
        %v783 = vrsqrt.pop %v772
        %v784 = vmul.f32 %v783, %v772
        %v785 = vmul.f32 %v784, %v783
        %v786 = vmul.f32 0.5, %v785
        %v787 = vsub.f32 1.5, %v786
        %v788 = vmul.f32 %v783, %v787
        %vm789 = vweird.f32 %v772
        %vm790 = vweird.f32 %v783
        %vm791 = vmor %vm789, %vm790
        %v792 = vsel %vm791, %v783, %v788
        %v795 = vrot.slane %v792, 4
        %v796 = vsel %vm316, %v782, %v795
        %v798 = vmul.f32 %v747, %v796
        %799 = vset.pattern.permute.xlu0 4
        %800 = vperm.xlu0 %799, %v177
        %v801 = vpop.permute.xlu0 %800
        %v804 = vperm.slane %v798, 0
        %v805 = vperm.slane %v798, 4
        %v808 = vperm.slane %v804, 0
        %v809 = vperm.slane %v805, 0
        %v810 = vmul.f32 %v801, %v808
        %v811 = vmul.f32 %v801, %v809
        %812 = vset.pattern.permute.xlu0 5
        %813 = vperm.xlu0 %812, %v177
        %v814 = vpop.permute.xlu0 %813
        %v816 = vperm.slane %v798, 1
        %v817 = vperm.slane %v798, 5
        %v820 = vperm.slane %v816, 1
        %v821 = vperm.slane %v817, 1
        %v822 = vmul.f32 %v814, %v820
        %v823 = vmul.f32 %v814, %v821
        %v824 = vadd.f32 %v810, %v822
        %v825 = vadd.f32 %v811, %v823
        %826 = vset.pattern.permute.xlu0 6
        %827 = vperm.xlu0 %826, %v177
        %v828 = vpop.permute.xlu0 %827
        %v830 = vperm.slane %v798, 2
        %v831 = vperm.slane %v798, 6
        %v834 = vperm.slane %v830, 2
        %v835 = vperm.slane %v831, 2
        %v836 = vmul.f32 %v828, %v834
        %v837 = vmul.f32 %v828, %v835
        %v838 = vadd.f32 %v824, %v836
        %v839 = vadd.f32 %v825, %v837
        %840 = vset.pattern.permute.xlu0 7
        %841 = vperm.xlu0 %840, %v177
        %v842 = vpop.permute.xlu0 %841
        %v844 = vperm.slane %v798, 3
        %v845 = vperm.slane %v798, 7
        %v848 = vperm.slane %v844, 3
        %v849 = vperm.slane %v845, 3
        %v850 = vmul.f32 %v842, %v848
        %v851 = vmul.f32 %v842, %v849
        %v852 = vadd.f32 %v838, %v850
        %v853 = vadd.f32 %v839, %v851
        %854 = vset.pattern.permute.xlu0 31
        %855 = vperm.xlu0 %854, %v177
        %v856 = vpop.permute.xlu0 %855
        %v858 = vadd.f32 %v852, %v856
        %v859 = vadd.f32 %v853, %v856
        %v862 = vrot.slane %v858, 4
        %v863 = vrot.slane %v859, 4
        %v866 = vmul.f32 %v858, %v862
        %v867 = vmul.f32 %v859, %v863
        %868 = vset.pattern.permute.xlu0 16
        %869 = vperm.xlu0 %868, %v177
        %v870 = vpop.permute.xlu0 %869
        %v872 = vperm.slane %v866, 0
        %v873 = vperm.slane %v867, 0
        %v874 = vmul.f32 %v870, %v872
        %v875 = vmul.f32 %v870, %v873
        %876 = vset.pattern.permute.xlu0 17
        %877 = vperm.xlu0 %876, %v177
        %v878 = vpop.permute.xlu0 %877
        %v880 = vperm.slane %v866, 1
        %v881 = vperm.slane %v867, 1
        %v882 = vmul.f32 %v878, %v880
        %v883 = vmul.f32 %v878, %v881
        %v884 = vadd.f32 %v874, %v882
        %v885 = vadd.f32 %v875, %v883
        %886 = vset.pattern.permute.xlu0 18
        %887 = vperm.xlu0 %886, %v177
        %v888 = vpop.permute.xlu0 %887
        %v890 = vperm.slane %v866, 2
        %v891 = vperm.slane %v867, 2
        %v892 = vmul.f32 %v888, %v890
        %v893 = vmul.f32 %v888, %v891
        %v894 = vadd.f32 %v884, %v892
        %v895 = vadd.f32 %v885, %v893
        %896 = vset.pattern.permute.xlu0 19
        %897 = vperm.xlu0 %896, %v177
        %v898 = vpop.permute.xlu0 %897
        %v900 = vperm.slane %v866, 3
        %v901 = vperm.slane %v867, 3
        %v902 = vmul.f32 %v898, %v900
        %v903 = vmul.f32 %v898, %v901
        %v904 = vadd.f32 %v894, %v902
        %v905 = vadd.f32 %v895, %v903
        %906 = vset.pattern.permute.xlu0 35
        %907 = vperm.xlu0 %906, %v177
        %v908 = vpop.permute.xlu0 %907
        %v910 = vadd.f32 %v904, %v908
        %v911 = vadd.f32 %v905, %v908
        %912 = vset.pattern.permute.xlu0 36
        %913 = vperm.xlu0 %912, %v177
        %v914 = vpop.permute.xlu0 %913
        %v916 = vmul.f32 %v910, %v914
        %v917 = vmul.f32 %v911, %v914
        %v920 = vrot.slane %v917, 4
        %v921 = vsel %vm316, %v916, %v920
        %v923 = vadd.f32 %v719, %v921
        %924 = vst [vmem:[%s176] sm:$0xff] %v923
        %s925 = sand.u32 %s75, 1
        %s926 = scalar_lea.sflag [#allocation4], %s925
        %s927 = sand.u32 %s75, 1
        %s928 = smul.addr %s927, 8
        %s929 = scalar_lea.vmem [#allocation7], %s928
        // Predicated region
        $region37: #{tpu_custom_call.1} parent=27 // pred_check
          %p930 = pneg %p85
        $region38: #{tpu_custom_call.1} parent=27 // pred_check_branch
          %932 = sbr.rel (%p930) target = $region40
        $region39: #{tpu_custom_call.1} parent=27 // pred_region
          %934 = vsyncadd %s926, 0
          %s935 = smul.addr %s20, 2
          %s936 = smul.addr %s935, 4
          %s937 = scalar_lea.hbm %s2, %s936
          %s939 = sshll.u32 %s929, 4
          %s940 = int_to_ptr.vmem [resolvable:$true] %s939
          %s941 = sshll.u32 %s937, 4
          %s942 = int_to_ptr.hbm [resolvable:$true] %s941
          %944 = dma.vmem_to_hbm [thread:$0]  %s940, 128, %s942, %s926
        $region40: #{tpu_custom_call.1} parent=27 // pred_fallthru
          _
      $region28: #{tpu_custom_call.1} parent=5 // pred_fallthru
        _
      %p945 = scmp.le.s32.totalorder 2, %s15
      // Predicated region
      $region41: #{tpu_custom_call.1} parent=5 // pred_check
        %p946 = pneg %p945
      $region42: #{tpu_custom_call.1} parent=5 // pred_check_branch
        %948 = sbr.rel (%p946) target = $region44
      $region43: #{tpu_custom_call.1} parent=5 // pred_region
        %s949 = ssub.s32 %s15, 2
        // Predicated region
        $region45: #{tpu_custom_call.1} parent=43 // pred_check
          %p950 = pneg %p91
        $region46: #{tpu_custom_call.1} parent=43 // pred_check_branch
          %952 = sbr.rel (%p950) target = $region48
        $region47: #{tpu_custom_call.1} parent=43 // pred_region
          %s953 = sand.u32 %s76, 1
          %s954 = scalar_lea.sflag [#allocation4], %s953
          %s955 = sand.u32 %s76, 1
          %s956 = smul.addr %s955, 8
          %s957 = scalar_lea.vmem [#allocation7], %s956
          %959 = dma.done %s954, 128
        $region48: #{tpu_custom_call.1} parent=43 // pred_fallthru
          _
      $region44: #{tpu_custom_call.1} parent=5 // pred_fallthru
        _
    $region6: #{tpu_custom_call.1} parent=1 // loop_footer
      %s19 = sadd.s32 1, %s15
    $region7: #{tpu_custom_call.1} parent=1 // loop_footer_branch
      %14 = sbr.rel target = $region3
    $region8: #{tpu_custom_call.1} parent=1 // loop_exit
      _
    %960 = vsyncpa [#allocation3], 1
    %s961 = scalar_lea.sflag [#allocation3], 1
    %962 = vsyncpa %s961, 1
    %963 = vsyncpa [#allocation6], 1
    %964 = vsyncpa [#allocation4], 1
    %s965 = scalar_lea.sflag [#allocation4], 1
    %966 = vsyncpa %s965, 1

</llo_original>
